<compile_context>
chip_gen: v6e
topology: v6e:2x2x1
jax: 0.10.0
libtpu: 0.0.40
codegen_flags: <defaults>
</compile_context>

<pallas_src>
import functools

import jax
import jax.numpy as jnp
import numpy as np
from jax import lax
from jax.experimental import pallas as pl
from jax.experimental.pallas import tpu as pltpu


# --------------------------------------------------------------------------------------
# Fused kernel: conv1 + pool1 + conv2 + pool2 + linear for `bs` batch items per step.
# --------------------------------------------------------------------------------------
def _fused_cnn_kernel(x_ref, w1_ref, b1_ref, w2_ref, b2_ref, lw_ref, lb_ref,
                      o_ref, xpad_ref, p1_ref, *,
                      bs, c1h, c1w, p1h, p1w, c2h, c2w, rin, win):
    """x_ref: (bs, rin, W, Cin).  w1_ref: (Cin, 3*16) fused conv1 taps.
    w2_ref: (9, 16, 64) one plane per (kh,kw).  lw_ref: (64, D).  o_ref: (1, bs, D).
    xpad_ref: (bs, c1h+2, c1w, Cin) zero-padded conv1 window.  p1_ref: (bs, p1h, p1w, 16)."""
    cin = xpad_ref.shape[-1]
    cout1 = p1_ref.shape[-1]
    cout2 = b2_ref.shape[-1]
    hp = c1h + 2
    wp = c1w
    m1 = c1h * wp
    dt = xpad_ref.dtype

    # ---- conv1 input window: zero ONLY the padding border, then one aligned store -----
    xpad_ref[:, 0:1, :, :] = jnp.zeros((bs, 1, wp, cin), dt)            # top pad row
    if 1 + rin < hp:                                                    # bottom pad rows
        xpad_ref[:, 1 + rin:, :, :] = jnp.zeros((bs, hp - 1 - rin, wp, cin), dt)
    xpad_ref[:, :, 0:1, :] = jnp.zeros((bs, hp, 1, cin), dt)            # left pad col
    if 1 + win < wp:                                                    # right pad cols
        xpad_ref[:, :, 1 + win:, :] = jnp.zeros((bs, hp, wp - 1 - win, cin), dt)
    xpad_ref[:, 1:1 + rin, 1:1 + win, :] = x_ref[:, :, :win, :]

    # ---- conv1 (3,1) + bias + ReLU: ONE fused matmul + 3 shifted sublane-aligned adds -
    xall = xpad_ref[...].reshape(bs * hp * wp, cin)
    acc = jnp.dot(xall, w1_ref[...], preferred_element_type=jnp.float32)  # (bs*hp*wp, 48)
    acc = acc.reshape(bs, hp * wp, 3 * cout1)
    c1 = acc[:, 0:m1, 0:cout1]
    for kh in range(1, 3):
        c1 = c1 + acc[:, kh * wp:kh * wp + m1, kh * cout1:(kh + 1) * cout1]
    c1 = jnp.maximum(c1 + b1_ref[...], 0.0)                            # (bs, m1, 16)
    c1 = c1.reshape(bs, c1h, wp, cout1)

    # ---- maxpool1 (3x3, s=2, p=1): only the top-left (p1h, p1w) block. Padded
    #      positions are excluded from each window (== torch's -inf padding). ----------
    for a in range(p1h):
        rlo, rhi = max(0, 2 * a - 1), min(c1h, 2 * a + 2)
        rm = c1[:, rlo]                                                # (bs, c1w, 16)
        for r in range(rlo + 1, rhi):
            rm = jnp.maximum(rm, c1[:, r])
        pairm = jnp.maximum(rm[:, :wp - 1], rm[:, 1:]) if wp >= 2 else rm
        for b in range(p1w):
            clo, chi = max(0, 2 * b - 1), min(c1w, 2 * b + 2)
            if chi - clo == 1:
                v = rm[:, clo:clo + 1]
            elif chi - clo == 2:
                v = pairm[:, clo:clo + 1]
            else:  # window of 3 columns
                v = jnp.maximum(pairm[:, clo:clo + 1], pairm[:, clo + 1:clo + 2])
            p1_ref[:, a:a + 1, b:b + 1, :] = v[:, :, None, :]

    # ---- conv2 (3,3 valid) + bias + ReLU: 9 accumulating sub-block matmuls -------------
    m2 = c2h * c2w
    p1v = p1_ref[...]                                                   # (bs, p1h, p1w, 16)

    def patch(di, dj):
        return p1v[:, di:di + c2h, dj:dj + c2w, :].reshape(bs * m2, cout1)

    acc2 = jnp.dot(patch(0, 0), w2_ref[0], preferred_element_type=jnp.float32)
    for t in range(1, 9):
        di, dj = divmod(t, 3)
        acc2 = acc2 + jnp.dot(patch(di, dj), w2_ref[t],
                              preferred_element_type=jnp.float32)
    c2 = jnp.maximum(acc2 + b2_ref[...], 0.0)                           # (bs*m2, 64)

    # ---- maxpool2: only output (0,0) is consumed == max over the computed block --------
    feat = jnp.max(c2.reshape(bs, m2, cout2), axis=1)                   # (bs, 64)

    # ---- linear head --------------------------------------------------------------------
    o_ref[0] = (jnp.dot(feat, lw_ref[...], preferred_element_type=jnp.float32)
                + lb_ref[...])


# --------------------------------------------------------------------------------------
# Wrapper
# --------------------------------------------------------------------------------------
def _num_grid_steps(n):
    """2 'parallel' steps on megacore / dual-TC chips, 1 on single-TC v5e/v6e."""
    kind = ""
    try:
        kind = jax.devices()[0].device_kind.lower()
    except Exception:
        pass
    single_tc = any(t in kind for t in
                    ("v5e", "v5 lite", "v5lite", "v6e", "v6 lite", "v6lite"))
    return 1 if (single_tc or n < 2) else 2


def cnn_classifier_forward(x, params, *, input_format="NHWC",
                           compute_dtype=jnp.float32, num_steps=None):
    """params = (cw1 (3,200,16), cb1 (16,), cw2 (3,3,16,64), cb2 (64,), lw (64,D), lb (D,)).

    `x` is NHWC by default (no standalone transpose kernel runs); pass
    input_format="NCHW" for PyTorch-layout inputs.  compute_dtype=jnp.bfloat16 halves
    the input DMA and doubles MXU rate on v6e/v7x (f32 accumulation is kept)."""
    cw1, cb1, cw2, cb2, lw, lb = params
    if input_format == "NCHW":
        x = jnp.transpose(x, (0, 2, 3, 1))
    n, h, w, c_in = x.shape
    kh1, cin_w, cout1 = cw1.shape
    cout2 = cw2.shape[3]
    out_dim = lw.shape[1]
    assert kh1 == 3 and cin_w == c_in

    # ---- static receptive-field geometry (only maxpool2 pixel (0,0) is consumed) -------
    h1f, w1f = h, w + 2                                  # conv1 output (kernel (3,1), pad 1)
    ho1, wo1 = (h1f - 1) // 2 + 1, (w1f - 1) // 2 + 1    # maxpool1 output
    hc2, wc2 = ho1 - 2, wo1 - 2                          # conv2 output (3x3 valid)
    assert hc2 >= 1 and wc2 >= 1, "input spatially too small for CNNClassifier"
    c2h, c2w = min(2, hc2), min(2, wc2)                  # conv2 rows/cols feeding pool2(0,0)
    p1h, p1w = c2h + 2, c2w + 2                          # maxpool1 rows/cols needed
    c1h, c1w = min(2 * p1h, h1f), min(2 * p1w, w1f)      # conv1 rows/cols needed
    rin = min(c1h + 1, h)                                # input rows feeding them
    win = min(c1w - 1, w)                                # input cols feeding them

    # ---- batch stacking: bs items per grid step -----------------------------------------
    if num_steps is None:
        num_steps = _num_grid_steps(n)
    num_steps = max(1, min(num_steps, n))
    bs = -(-n // num_steps)
    n_pad = bs * num_steps
    if n_pad != n:
        x = jnp.concatenate([x, jnp.zeros((n_pad - n, h, w, c_in), x.dtype)], axis=0)
    x = x.astype(compute_dtype)

    # ---- parameter-side reshapes (tiny; constant-folded under jit) ----------------------
    w1cat = jnp.transpose(cw1, (1, 0, 2)).reshape(c_in, 3 * cout1).astype(compute_dtype)
    w2r = cw2.reshape(9, cw2.shape[2], cout2).astype(jnp.float32)       # (9, 16, 64)
    b1r = cb1.reshape(1, cout1).astype(jnp.float32)
    b2r = cb2.reshape(1, cout2).astype(jnp.float32)
    lbr = lb.reshape(1, out_dim).astype(jnp.float32)

    kernel = functools.partial(
        _fused_cnn_kernel, bs=bs, c1h=c1h, c1w=c1w, p1h=p1h, p1w=p1w,
        c2h=c2h, c2w=c2w, rin=rin, win=win)

    out = pl.pallas_call(
        kernel,
        out_shape=jax.ShapeDtypeStruct((num_steps, bs, out_dim), jnp.float32),
        grid_spec=pltpu.PrefetchScalarGridSpec(
            num_scalar_prefetch=0,
            grid=(num_steps,),
            in_specs=[
                pl.BlockSpec((bs, rin, w, c_in), lambda s: (s, 0, 0, 0)),
                pl.BlockSpec((c_in, 3 * cout1), lambda s: (0, 0)),
                pl.BlockSpec((1, cout1), lambda s: (0, 0)),
                pl.BlockSpec((9, cw2.shape[2], cout2), lambda s: (0, 0, 0)),
                pl.BlockSpec((1, cout2), lambda s: (0, 0)),
                pl.BlockSpec((cout2, out_dim), lambda s: (0, 0)),
                pl.BlockSpec((1, out_dim), lambda s: (0, 0)),
            ],
            out_specs=pl.BlockSpec((1, bs, out_dim), lambda s: (s, 0, 0)),
            scratch_shapes=[
                pltpu.VMEM((bs, c1h + 2, c1w, c_in), compute_dtype),
                pltpu.VMEM((bs, p1h, p1w, cout1), jnp.float32),
            ],
        ),
        compiler_params=pltpu.CompilerParams(dimension_semantics=("parallel",)),
    )(x, w1cat, b1r, w2r, b2r, jnp.asarray(lw, jnp.float32), lbr)

    return out.reshape(n_pad, out_dim)[:n]


# --------------------------------------------------------------------------------------
# Pure-JAX reference (mirrors the PyTorch forward exactly, full computation)
# --------------------------------------------------------------------------------------
def reference_forward(x_nchw, params):
    cw1, cb1, cw2, cb2, lw, lb = params
    w1_oihw = jnp.transpose(cw1, (2, 1, 0))[..., None]                  # (16, 200, 3, 1)
    y = lax.conv_general_dilated(
        x_nchw, w1_oihw, window_strides=(1, 1), padding=((1, 1), (1, 1)),
        dimension_numbers=("NCHW", "OIHW", "NCHW"))
    y = jax.nn.relu(y + cb1.reshape(1, -1, 1, 1))
    y = lax.reduce_window(y, -jnp.inf, lax.max, (1, 1, 3, 3), (1, 1, 2, 2),
                          ((0, 0), (0, 0), (1, 1), (1, 1)))
    w2_oihw = jnp.transpose(cw2, (3, 2, 0, 1))                          # (64, 16, 3, 3)
    y = lax.conv_general_dilated(
        y, w2_oihw, window_strides=(1, 1), padding="VALID",
        dimension_numbers=("NCHW", "OIHW", "NCHW"))
    y = jax.nn.relu(y + cb2.reshape(1, -1, 1, 1))
    y = lax.reduce_window(y, -jnp.inf, lax.max, (1, 1, 3, 3), (1, 1, 2, 2),
                          ((0, 0), (0, 0), (1, 1), (1, 1)))
    feat = y[:, :, 0, 0]
    return feat @ lw + lb


# --------------------------------------------------------------------------------------
if __name__ == "__main__":
    OUT_DIM = 5
    N, C, H, W = 2, 200, 12, 8                                          # module needs C=200

    key = jax.random.PRNGKey(0)
    ks = jax.random.split(key, 7)
    cw1 = 0.05 * jax.random.normal(ks[0], (3, 200, 16), jnp.float32)    # (kh, cin, cout)
    cb1 = 0.05 * jax.random.normal(ks[1], (16,), jnp.float32)
    cw2 = 0.05 * jax.random.normal(ks[2], (3, 3, 16, 64), jnp.float32)  # (kh, kw, cin, cout)
    cb2 = 0.05 * jax.random.normal(ks[3], (64,), jnp.float32)
    lw = 0.05 * jax.random.normal(ks[4], (64, OUT_DIM), jnp.float32)    # (in, out) == torch W.T
    lb = 0.05 * jax.random.normal(ks[5], (OUT_DIM,), jnp.float32)
    x_nchw = jax.random.normal(ks[6], (N, C, H, W), jnp.float32)
    params = (cw1, cb1, cw2, cb2, lw, lb)

    # Producer supplies NHWC so the kernel wrapper runs no standalone transpose kernel.
    x_nhwc = jnp.transpose(x_nchw, (0, 2, 3, 1))

    fwd = jax.jit(cnn_classifier_forward)
    out = jax.block_until_ready(fwd(x_nhwc, params))

    ref = jax.block_until_ready(reference_forward(x_nchw, params))
    np.testing.assert_allclose(np.asarray(out), np.asarray(ref), rtol=1e-3, atol=1e-3)

    print("KERNEL_OK")
</pallas_src>

<mosaic_0001>
module attributes {stable_mosaic.version = 11 : i64} {
  func.func @_fused_cnn_kernel(%arg0: i32, %arg1: memref<1x9x8x200xf32, #tpu.memory_space<vmem>>, %arg2: memref<200x48xf32, #tpu.memory_space<vmem>>, %arg3: memref<1x16xf32, #tpu.memory_space<vmem>>, %arg4: memref<9x16x64xf32, #tpu.memory_space<vmem>>, %arg5: memref<1x64xf32, #tpu.memory_space<vmem>>, %arg6: memref<64x5xf32, #tpu.memory_space<vmem>>, %arg7: memref<1x5xf32, #tpu.memory_space<vmem>>, %arg8: memref<1x1x5xf32, #tpu.memory_space<vmem>>, %arg9: memref<1x10x8x200xf32, #tpu.memory_space<vmem>>, %arg10: memref<1x4x4x16xf32, #tpu.memory_space<vmem>>) attributes {dimension_semantics = [#tpu.dimension_semantics<parallel>], iteration_bounds = array<i64: 2>, scalar_prefetch = 0 : i64, scratch_operands = 2 : i64, tpu.core_type = #tpu.core_type<tc>, window_params = [{transform_indices = @transform_0, window_bounds = array<i64: 1, 9, 8, 200>}, {pipeline_mode = #tpu.pipeline_mode<synchronous>, transform_indices = @transform_1, window_bounds = array<i64: 200, 48>}, {pipeline_mode = #tpu.pipeline_mode<synchronous>, transform_indices = @transform_2, window_bounds = array<i64: 1, 16>}, {pipeline_mode = #tpu.pipeline_mode<synchronous>, transform_indices = @transform_3, window_bounds = array<i64: 9, 16, 64>}, {pipeline_mode = #tpu.pipeline_mode<synchronous>, transform_indices = @transform_4, window_bounds = array<i64: 1, 64>}, {pipeline_mode = #tpu.pipeline_mode<synchronous>, transform_indices = @transform_5, window_bounds = array<i64: 64, 5>}, {pipeline_mode = #tpu.pipeline_mode<synchronous>, transform_indices = @transform_6, window_bounds = array<i64: 1, 5>}, {transform_indices = @transform_7, window_bounds = array<i64: 1, 1, 5>}]} {
    %cst = arith.constant 0.000000e+00 : f32
    %0 = vector.broadcast %cst : f32 to vector<1x1x8x200xf32>
    %c0 = arith.constant 0 : index
    %c0_0 = arith.constant 0 : index
    %c0_1 = arith.constant 0 : index
    %c0_2 = arith.constant 0 : index
    %1 = vector.load %arg9[%c0, %c0_0, %c0_1, %c0_2] : memref<1x10x8x200xf32, #tpu.memory_space<vmem>>, vector<1x1x8x200xf32>
    tpu.vector_store %arg9[%c0, %c0_0, %c0_1, %c0_2], %0 {strides = array<i32>} : memref<1x10x8x200xf32, #tpu.memory_space<vmem>>, vector<1x1x8x200xf32>,
    %cst_3 = arith.constant 0.000000e+00 : f32
    %2 = vector.broadcast %cst_3 : f32 to vector<1x10x1x200xf32>
    %c0_4 = arith.constant 0 : index
    %c0_5 = arith.constant 0 : index
    %c0_6 = arith.constant 0 : index
    %c0_7 = arith.constant 0 : index
    %3 = vector.load %arg9[%c0_4, %c0_5, %c0_6, %c0_7] : memref<1x10x8x200xf32, #tpu.memory_space<vmem>>, vector<1x10x1x200xf32>
    tpu.vector_store %arg9[%c0_4, %c0_5, %c0_6, %c0_7], %2 {strides = array<i32>} : memref<1x10x8x200xf32, #tpu.memory_space<vmem>>, vector<1x10x1x200xf32>,
    %c0_8 = arith.constant 0 : index
    %c0_9 = arith.constant 0 : index
    %c0_10 = arith.constant 0 : index
    %c0_11 = arith.constant 0 : index
    %4 = vector.load %arg1[%c0_8, %c0_9, %c0_10, %c0_11] : memref<1x9x8x200xf32, #tpu.memory_space<vmem>>, vector<1x9x7x200xf32>
    %c0_12 = arith.constant 0 : index
    %c1 = arith.constant 1 : index
    %c1_13 = arith.constant 1 : index
    %c0_14 = arith.constant 0 : index
    %5 = vector.load %arg9[%c0_12, %c1, %c1_13, %c0_14] : memref<1x10x8x200xf32, #tpu.memory_space<vmem>>, vector<1x9x7x200xf32>
    tpu.vector_store %arg9[%c0_12, %c1, %c1_13, %c0_14], %4 {strides = array<i32>} : memref<1x10x8x200xf32, #tpu.memory_space<vmem>>, vector<1x9x7x200xf32>,
    %c0_15 = arith.constant 0 : index
    %c0_16 = arith.constant 0 : index
    %c0_17 = arith.constant 0 : index
    %c0_18 = arith.constant 0 : index
    %6 = vector.load %arg9[%c0_15, %c0_16, %c0_17, %c0_18] : memref<1x10x8x200xf32, #tpu.memory_space<vmem>>, vector<1x10x8x200xf32>
    %7 = vector.shape_cast %6 : vector<1x10x8x200xf32> to vector<80x200xf32>
    %c0_19 = arith.constant 0 : index
    %c0_20 = arith.constant 0 : index
    %8 = vector.load %arg2[%c0_19, %c0_20] : memref<200x48xf32, #tpu.memory_space<vmem>>, vector<200x48xf32>
    %cst_21 = arith.constant dense<0.000000e+00> : vector<80x48xf32>
    %9 = tpu.matmul %7, %8, %cst_21 {dimension_numbers = #tpu.dot_dimension_numbers<[1], [0], [0], [1], [0, 0, 1, 1], [], []>} : vector<80x200xf32>, vector<200x48xf32>, vector<80x48xf32> -> vector<80x48xf32>
    %10 = vector.shape_cast %9 : vector<80x48xf32> to vector<1x80x48xf32>
    %11 = vector.extract_strided_slice %10 {offsets = [0, 0, 0], sizes = [1, 64, 16], strides = [1, 1, 1]} : vector<1x80x48xf32> to vector<1x64x16xf32>
    %12 = vector.extract_strided_slice %10 {offsets = [0, 8, 16], sizes = [1, 64, 16], strides = [1, 1, 1]} : vector<1x80x48xf32> to vector<1x64x16xf32>
    %13 = arith.addf %11, %12 : vector<1x64x16xf32>
    %14 = vector.extract_strided_slice %10 {offsets = [0, 16, 32], sizes = [1, 64, 16], strides = [1, 1, 1]} : vector<1x80x48xf32> to vector<1x64x16xf32>
    %15 = arith.addf %13, %14 : vector<1x64x16xf32>
    %c0_22 = arith.constant 0 : index
    %c0_23 = arith.constant 0 : index
    %16 = vector.load %arg3[%c0_22, %c0_23] : memref<1x16xf32, #tpu.memory_space<vmem>>, vector<1x16xf32>
    %17 = vector.shape_cast %16 : vector<1x16xf32> to vector<1x1x16xf32>
    %18 = vector.broadcast %17 : vector<1x1x16xf32> to vector<1x64x16xf32>
    %19 = arith.addf %15, %18 : vector<1x64x16xf32>
    %cst_24 = arith.constant 0.000000e+00 : f32
    %20 = vector.broadcast %cst_24 : f32 to vector<1x64x16xf32>
    %21 = arith.maximumf %19, %20 : vector<1x64x16xf32>
    %22 = vector.shape_cast %21 : vector<1x64x16xf32> to vector<1x8x8x16xf32>
    %23 = vector.extract_strided_slice %22 {offsets = [0, 0, 0, 0], sizes = [1, 1, 8, 16], strides = [1, 1, 1, 1]} : vector<1x8x8x16xf32> to vector<1x1x8x16xf32>
    %24 = vector.shape_cast %23 : vector<1x1x8x16xf32> to vector<1x8x16xf32>
    %25 = vector.extract_strided_slice %22 {offsets = [0, 1, 0, 0], sizes = [1, 1, 8, 16], strides = [1, 1, 1, 1]} : vector<1x8x8x16xf32> to vector<1x1x8x16xf32>
    %26 = vector.shape_cast %25 : vector<1x1x8x16xf32> to vector<1x8x16xf32>
    %27 = arith.maximumf %24, %26 : vector<1x8x16xf32>
    %28 = vector.extract_strided_slice %27 {offsets = [0, 0, 0], sizes = [1, 7, 16], strides = [1, 1, 1]} : vector<1x8x16xf32> to vector<1x7x16xf32>
    %29 = vector.extract_strided_slice %27 {offsets = [0, 1, 0], sizes = [1, 7, 16], strides = [1, 1, 1]} : vector<1x8x16xf32> to vector<1x7x16xf32>
    %30 = arith.maximumf %28, %29 : vector<1x7x16xf32>
    %31 = vector.extract_strided_slice %30 {offsets = [0, 0, 0], sizes = [1, 1, 16], strides = [1, 1, 1]} : vector<1x7x16xf32> to vector<1x1x16xf32>
    %32 = vector.shape_cast %31 : vector<1x1x16xf32> to vector<1x1x1x16xf32>
    %c0_25 = arith.constant 0 : index
    %c0_26 = arith.constant 0 : index
    %c0_27 = arith.constant 0 : index
    %c0_28 = arith.constant 0 : index
    %33 = vector.load %arg10[%c0_25, %c0_26, %c0_27, %c0_28] : memref<1x4x4x16xf32, #tpu.memory_space<vmem>>, vector<1x1x1x16xf32>
    tpu.vector_store %arg10[%c0_25, %c0_26, %c0_27, %c0_28], %32 {strides = array<i32>} : memref<1x4x4x16xf32, #tpu.memory_space<vmem>>, vector<1x1x1x16xf32>,
    %34 = vector.extract_strided_slice %30 {offsets = [0, 1, 0], sizes = [1, 1, 16], strides = [1, 1, 1]} : vector<1x7x16xf32> to vector<1x1x16xf32>
    %35 = vector.extract_strided_slice %30 {offsets = [0, 2, 0], sizes = [1, 1, 16], strides = [1, 1, 1]} : vector<1x7x16xf32> to vector<1x1x16xf32>
    %36 = arith.maximumf %34, %35 : vector<1x1x16xf32>
    %37 = vector.shape_cast %36 : vector<1x1x16xf32> to vector<1x1x1x16xf32>
    %c0_29 = arith.constant 0 : index
    %c0_30 = arith.constant 0 : index
    %c1_31 = arith.constant 1 : index
    %c0_32 = arith.constant 0 : index
    %38 = vector.load %arg10[%c0_29, %c0_30, %c1_31, %c0_32] : memref<1x4x4x16xf32, #tpu.memory_space<vmem>>, vector<1x1x1x16xf32>
    tpu.vector_store %arg10[%c0_29, %c0_30, %c1_31, %c0_32], %37 {strides = array<i32>} : memref<1x4x4x16xf32, #tpu.memory_space<vmem>>, vector<1x1x1x16xf32>,
    %39 = vector.extract_strided_slice %30 {offsets = [0, 3, 0], sizes = [1, 1, 16], strides = [1, 1, 1]} : vector<1x7x16xf32> to vector<1x1x16xf32>
    %40 = vector.extract_strided_slice %30 {offsets = [0, 4, 0], sizes = [1, 1, 16], strides = [1, 1, 1]} : vector<1x7x16xf32> to vector<1x1x16xf32>
    %41 = arith.maximumf %39, %40 : vector<1x1x16xf32>
    %42 = vector.shape_cast %41 : vector<1x1x16xf32> to vector<1x1x1x16xf32>
    %c0_33 = arith.constant 0 : index
    %c0_34 = arith.constant 0 : index
    %c2 = arith.constant 2 : index
    %c0_35 = arith.constant 0 : index
    %43 = vector.load %arg10[%c0_33, %c0_34, %c2, %c0_35] : memref<1x4x4x16xf32, #tpu.memory_space<vmem>>, vector<1x1x1x16xf32>
    tpu.vector_store %arg10[%c0_33, %c0_34, %c2, %c0_35], %42 {strides = array<i32>} : memref<1x4x4x16xf32, #tpu.memory_space<vmem>>, vector<1x1x1x16xf32>,
    %44 = vector.extract_strided_slice %30 {offsets = [0, 5, 0], sizes = [1, 1, 16], strides = [1, 1, 1]} : vector<1x7x16xf32> to vector<1x1x16xf32>
    %45 = vector.extract_strided_slice %30 {offsets = [0, 6, 0], sizes = [1, 1, 16], strides = [1, 1, 1]} : vector<1x7x16xf32> to vector<1x1x16xf32>
    %46 = arith.maximumf %44, %45 : vector<1x1x16xf32>
    %47 = vector.shape_cast %46 : vector<1x1x16xf32> to vector<1x1x1x16xf32>
    %c0_36 = arith.constant 0 : index
    %c0_37 = arith.constant 0 : index
    %c3 = arith.constant 3 : index
    %c0_38 = arith.constant 0 : index
    %48 = vector.load %arg10[%c0_36, %c0_37, %c3, %c0_38] : memref<1x4x4x16xf32, #tpu.memory_space<vmem>>, vector<1x1x1x16xf32>
    tpu.vector_store %arg10[%c0_36, %c0_37, %c3, %c0_38], %47 {strides = array<i32>} : memref<1x4x4x16xf32, #tpu.memory_space<vmem>>, vector<1x1x1x16xf32>,
    %49 = vector.extract_strided_slice %22 {offsets = [0, 1, 0, 0], sizes = [1, 1, 8, 16], strides = [1, 1, 1, 1]} : vector<1x8x8x16xf32> to vector<1x1x8x16xf32>
    %50 = vector.shape_cast %49 : vector<1x1x8x16xf32> to vector<1x8x16xf32>
    %51 = vector.extract_strided_slice %22 {offsets = [0, 2, 0, 0], sizes = [1, 1, 8, 16], strides = [1, 1, 1, 1]} : vector<1x8x8x16xf32> to vector<1x1x8x16xf32>
    %52 = vector.shape_cast %51 : vector<1x1x8x16xf32> to vector<1x8x16xf32>
    %53 = arith.maximumf %50, %52 : vector<1x8x16xf32>
    %54 = vector.extract_strided_slice %22 {offsets = [0, 3, 0, 0], sizes = [1, 1, 8, 16], strides = [1, 1, 1, 1]} : vector<1x8x8x16xf32> to vector<1x1x8x16xf32>
    %55 = vector.shape_cast %54 : vector<1x1x8x16xf32> to vector<1x8x16xf32>
    %56 = arith.maximumf %53, %55 : vector<1x8x16xf32>
    %57 = vector.extract_strided_slice %56 {offsets = [0, 0, 0], sizes = [1, 7, 16], strides = [1, 1, 1]} : vector<1x8x16xf32> to vector<1x7x16xf32>
    %58 = vector.extract_strided_slice %56 {offsets = [0, 1, 0], sizes = [1, 7, 16], strides = [1, 1, 1]} : vector<1x8x16xf32> to vector<1x7x16xf32>
    %59 = arith.maximumf %57, %58 : vector<1x7x16xf32>
    %60 = vector.extract_strided_slice %59 {offsets = [0, 0, 0], sizes = [1, 1, 16], strides = [1, 1, 1]} : vector<1x7x16xf32> to vector<1x1x16xf32>
    %61 = vector.shape_cast %60 : vector<1x1x16xf32> to vector<1x1x1x16xf32>
    %c0_39 = arith.constant 0 : index
    %c1_40 = arith.constant 1 : index
    %c0_41 = arith.constant 0 : index
    %c0_42 = arith.constant 0 : index
    %62 = vector.load %arg10[%c0_39, %c1_40, %c0_41, %c0_42] : memref<1x4x4x16xf32, #tpu.memory_space<vmem>>, vector<1x1x1x16xf32>
    tpu.vector_store %arg10[%c0_39, %c1_40, %c0_41, %c0_42], %61 {strides = array<i32>} : memref<1x4x4x16xf32, #tpu.memory_space<vmem>>, vector<1x1x1x16xf32>,
    %63 = vector.extract_strided_slice %59 {offsets = [0, 1, 0], sizes = [1, 1, 16], strides = [1, 1, 1]} : vector<1x7x16xf32> to vector<1x1x16xf32>
    %64 = vector.extract_strided_slice %59 {offsets = [0, 2, 0], sizes = [1, 1, 16], strides = [1, 1, 1]} : vector<1x7x16xf32> to vector<1x1x16xf32>
    %65 = arith.maximumf %63, %64 : vector<1x1x16xf32>
    %66 = vector.shape_cast %65 : vector<1x1x16xf32> to vector<1x1x1x16xf32>
    %c0_43 = arith.constant 0 : index
    %c1_44 = arith.constant 1 : index
    %c1_45 = arith.constant 1 : index
    %c0_46 = arith.constant 0 : index
    %67 = vector.load %arg10[%c0_43, %c1_44, %c1_45, %c0_46] : memref<1x4x4x16xf32, #tpu.memory_space<vmem>>, vector<1x1x1x16xf32>
    tpu.vector_store %arg10[%c0_43, %c1_44, %c1_45, %c0_46], %66 {strides = array<i32>} : memref<1x4x4x16xf32, #tpu.memory_space<vmem>>, vector<1x1x1x16xf32>,
    %68 = vector.extract_strided_slice %59 {offsets = [0, 3, 0], sizes = [1, 1, 16], strides = [1, 1, 1]} : vector<1x7x16xf32> to vector<1x1x16xf32>
    %69 = vector.extract_strided_slice %59 {offsets = [0, 4, 0], sizes = [1, 1, 16], strides = [1, 1, 1]} : vector<1x7x16xf32> to vector<1x1x16xf32>
    %70 = arith.maximumf %68, %69 : vector<1x1x16xf32>
    %71 = vector.shape_cast %70 : vector<1x1x16xf32> to vector<1x1x1x16xf32>
    %c0_47 = arith.constant 0 : index
    %c1_48 = arith.constant 1 : index
    %c2_49 = arith.constant 2 : index
    %c0_50 = arith.constant 0 : index
    %72 = vector.load %arg10[%c0_47, %c1_48, %c2_49, %c0_50] : memref<1x4x4x16xf32, #tpu.memory_space<vmem>>, vector<1x1x1x16xf32>
    tpu.vector_store %arg10[%c0_47, %c1_48, %c2_49, %c0_50], %71 {strides = array<i32>} : memref<1x4x4x16xf32, #tpu.memory_space<vmem>>, vector<1x1x1x16xf32>,
    %73 = vector.extract_strided_slice %59 {offsets = [0, 5, 0], sizes = [1, 1, 16], strides = [1, 1, 1]} : vector<1x7x16xf32> to vector<1x1x16xf32>
    %74 = vector.extract_strided_slice %59 {offsets = [0, 6, 0], sizes = [1, 1, 16], strides = [1, 1, 1]} : vector<1x7x16xf32> to vector<1x1x16xf32>
    %75 = arith.maximumf %73, %74 : vector<1x1x16xf32>
    %76 = vector.shape_cast %75 : vector<1x1x16xf32> to vector<1x1x1x16xf32>
    %c0_51 = arith.constant 0 : index
    %c1_52 = arith.constant 1 : index
    %c3_53 = arith.constant 3 : index
    %c0_54 = arith.constant 0 : index
    %77 = vector.load %arg10[%c0_51, %c1_52, %c3_53, %c0_54] : memref<1x4x4x16xf32, #tpu.memory_space<vmem>>, vector<1x1x1x16xf32>
    tpu.vector_store %arg10[%c0_51, %c1_52, %c3_53, %c0_54], %76 {strides = array<i32>} : memref<1x4x4x16xf32, #tpu.memory_space<vmem>>, vector<1x1x1x16xf32>,
    %78 = vector.extract_strided_slice %22 {offsets = [0, 3, 0, 0], sizes = [1, 1, 8, 16], strides = [1, 1, 1, 1]} : vector<1x8x8x16xf32> to vector<1x1x8x16xf32>
    %79 = vector.shape_cast %78 : vector<1x1x8x16xf32> to vector<1x8x16xf32>
    %80 = vector.extract_strided_slice %22 {offsets = [0, 4, 0, 0], sizes = [1, 1, 8, 16], strides = [1, 1, 1, 1]} : vector<1x8x8x16xf32> to vector<1x1x8x16xf32>
    %81 = vector.shape_cast %80 : vector<1x1x8x16xf32> to vector<1x8x16xf32>
    %82 = arith.maximumf %79, %81 : vector<1x8x16xf32>
    %83 = vector.extract_strided_slice %22 {offsets = [0, 5, 0, 0], sizes = [1, 1, 8, 16], strides = [1, 1, 1, 1]} : vector<1x8x8x16xf32> to vector<1x1x8x16xf32>
    %84 = vector.shape_cast %83 : vector<1x1x8x16xf32> to vector<1x8x16xf32>
    %85 = arith.maximumf %82, %84 : vector<1x8x16xf32>
    %86 = vector.extract_strided_slice %85 {offsets = [0, 0, 0], sizes = [1, 7, 16], strides = [1, 1, 1]} : vector<1x8x16xf32> to vector<1x7x16xf32>
    %87 = vector.extract_strided_slice %85 {offsets = [0, 1, 0], sizes = [1, 7, 16], strides = [1, 1, 1]} : vector<1x8x16xf32> to vector<1x7x16xf32>
    %88 = arith.maximumf %86, %87 : vector<1x7x16xf32>
    %89 = vector.extract_strided_slice %88 {offsets = [0, 0, 0], sizes = [1, 1, 16], strides = [1, 1, 1]} : vector<1x7x16xf32> to vector<1x1x16xf32>
    %90 = vector.shape_cast %89 : vector<1x1x16xf32> to vector<1x1x1x16xf32>
    %c0_55 = arith.constant 0 : index
    %c2_56 = arith.constant 2 : index
    %c0_57 = arith.constant 0 : index
    %c0_58 = arith.constant 0 : index
    %91 = vector.load %arg10[%c0_55, %c2_56, %c0_57, %c0_58] : memref<1x4x4x16xf32, #tpu.memory_space<vmem>>, vector<1x1x1x16xf32>
    tpu.vector_store %arg10[%c0_55, %c2_56, %c0_57, %c0_58], %90 {strides = array<i32>} : memref<1x4x4x16xf32, #tpu.memory_space<vmem>>, vector<1x1x1x16xf32>,
    %92 = vector.extract_strided_slice %88 {offsets = [0, 1, 0], sizes = [1, 1, 16], strides = [1, 1, 1]} : vector<1x7x16xf32> to vector<1x1x16xf32>
    %93 = vector.extract_strided_slice %88 {offsets = [0, 2, 0], sizes = [1, 1, 16], strides = [1, 1, 1]} : vector<1x7x16xf32> to vector<1x1x16xf32>
    %94 = arith.maximumf %92, %93 : vector<1x1x16xf32>
    %95 = vector.shape_cast %94 : vector<1x1x16xf32> to vector<1x1x1x16xf32>
    %c0_59 = arith.constant 0 : index
    %c2_60 = arith.constant 2 : index
    %c1_61 = arith.constant 1 : index
    %c0_62 = arith.constant 0 : index
    %96 = vector.load %arg10[%c0_59, %c2_60, %c1_61, %c0_62] : memref<1x4x4x16xf32, #tpu.memory_space<vmem>>, vector<1x1x1x16xf32>
    tpu.vector_store %arg10[%c0_59, %c2_60, %c1_61, %c0_62], %95 {strides = array<i32>} : memref<1x4x4x16xf32, #tpu.memory_space<vmem>>, vector<1x1x1x16xf32>,
    %97 = vector.extract_strided_slice %88 {offsets = [0, 3, 0], sizes = [1, 1, 16], strides = [1, 1, 1]} : vector<1x7x16xf32> to vector<1x1x16xf32>
    %98 = vector.extract_strided_slice %88 {offsets = [0, 4, 0], sizes = [1, 1, 16], strides = [1, 1, 1]} : vector<1x7x16xf32> to vector<1x1x16xf32>
    %99 = arith.maximumf %97, %98 : vector<1x1x16xf32>
    %100 = vector.shape_cast %99 : vector<1x1x16xf32> to vector<1x1x1x16xf32>
    %c0_63 = arith.constant 0 : index
    %c2_64 = arith.constant 2 : index
    %c2_65 = arith.constant 2 : index
    %c0_66 = arith.constant 0 : index
    %101 = vector.load %arg10[%c0_63, %c2_64, %c2_65, %c0_66] : memref<1x4x4x16xf32, #tpu.memory_space<vmem>>, vector<1x1x1x16xf32>
    tpu.vector_store %arg10[%c0_63, %c2_64, %c2_65, %c0_66], %100 {strides = array<i32>} : memref<1x4x4x16xf32, #tpu.memory_space<vmem>>, vector<1x1x1x16xf32>,
    %102 = vector.extract_strided_slice %88 {offsets = [0, 5, 0], sizes = [1, 1, 16], strides = [1, 1, 1]} : vector<1x7x16xf32> to vector<1x1x16xf32>
    %103 = vector.extract_strided_slice %88 {offsets = [0, 6, 0], sizes = [1, 1, 16], strides = [1, 1, 1]} : vector<1x7x16xf32> to vector<1x1x16xf32>
    %104 = arith.maximumf %102, %103 : vector<1x1x16xf32>
    %105 = vector.shape_cast %104 : vector<1x1x16xf32> to vector<1x1x1x16xf32>
    %c0_67 = arith.constant 0 : index
    %c2_68 = arith.constant 2 : index
    %c3_69 = arith.constant 3 : index
    %c0_70 = arith.constant 0 : index
    %106 = vector.load %arg10[%c0_67, %c2_68, %c3_69, %c0_70] : memref<1x4x4x16xf32, #tpu.memory_space<vmem>>, vector<1x1x1x16xf32>
    tpu.vector_store %arg10[%c0_67, %c2_68, %c3_69, %c0_70], %105 {strides = array<i32>} : memref<1x4x4x16xf32, #tpu.memory_space<vmem>>, vector<1x1x1x16xf32>,
    %107 = vector.extract_strided_slice %22 {offsets = [0, 5, 0, 0], sizes = [1, 1, 8, 16], strides = [1, 1, 1, 1]} : vector<1x8x8x16xf32> to vector<1x1x8x16xf32>
    %108 = vector.shape_cast %107 : vector<1x1x8x16xf32> to vector<1x8x16xf32>
    %109 = vector.extract_strided_slice %22 {offsets = [0, 6, 0, 0], sizes = [1, 1, 8, 16], strides = [1, 1, 1, 1]} : vector<1x8x8x16xf32> to vector<1x1x8x16xf32>
    %110 = vector.shape_cast %109 : vector<1x1x8x16xf32> to vector<1x8x16xf32>
    %111 = arith.maximumf %108, %110 : vector<1x8x16xf32>
    %112 = vector.extract_strided_slice %22 {offsets = [0, 7, 0, 0], sizes = [1, 1, 8, 16], strides = [1, 1, 1, 1]} : vector<1x8x8x16xf32> to vector<1x1x8x16xf32>
    %113 = vector.shape_cast %112 : vector<1x1x8x16xf32> to vector<1x8x16xf32>
    %114 = arith.maximumf %111, %113 : vector<1x8x16xf32>
    %115 = vector.extract_strided_slice %114 {offsets = [0, 0, 0], sizes = [1, 7, 16], strides = [1, 1, 1]} : vector<1x8x16xf32> to vector<1x7x16xf32>
    %116 = vector.extract_strided_slice %114 {offsets = [0, 1, 0], sizes = [1, 7, 16], strides = [1, 1, 1]} : vector<1x8x16xf32> to vector<1x7x16xf32>
    %117 = arith.maximumf %115, %116 : vector<1x7x16xf32>
    %118 = vector.extract_strided_slice %117 {offsets = [0, 0, 0], sizes = [1, 1, 16], strides = [1, 1, 1]} : vector<1x7x16xf32> to vector<1x1x16xf32>
    %119 = vector.shape_cast %118 : vector<1x1x16xf32> to vector<1x1x1x16xf32>
    %c0_71 = arith.constant 0 : index
    %c3_72 = arith.constant 3 : index
    %c0_73 = arith.constant 0 : index
    %c0_74 = arith.constant 0 : index
    %120 = vector.load %arg10[%c0_71, %c3_72, %c0_73, %c0_74] : memref<1x4x4x16xf32, #tpu.memory_space<vmem>>, vector<1x1x1x16xf32>
    tpu.vector_store %arg10[%c0_71, %c3_72, %c0_73, %c0_74], %119 {strides = array<i32>} : memref<1x4x4x16xf32, #tpu.memory_space<vmem>>, vector<1x1x1x16xf32>,
    %121 = vector.extract_strided_slice %117 {offsets = [0, 1, 0], sizes = [1, 1, 16], strides = [1, 1, 1]} : vector<1x7x16xf32> to vector<1x1x16xf32>
    %122 = vector.extract_strided_slice %117 {offsets = [0, 2, 0], sizes = [1, 1, 16], strides = [1, 1, 1]} : vector<1x7x16xf32> to vector<1x1x16xf32>
    %123 = arith.maximumf %121, %122 : vector<1x1x16xf32>
    %124 = vector.shape_cast %123 : vector<1x1x16xf32> to vector<1x1x1x16xf32>
    %c0_75 = arith.constant 0 : index
    %c3_76 = arith.constant 3 : index
    %c1_77 = arith.constant 1 : index
    %c0_78 = arith.constant 0 : index
    %125 = vector.load %arg10[%c0_75, %c3_76, %c1_77, %c0_78] : memref<1x4x4x16xf32, #tpu.memory_space<vmem>>, vector<1x1x1x16xf32>
    tpu.vector_store %arg10[%c0_75, %c3_76, %c1_77, %c0_78], %124 {strides = array<i32>} : memref<1x4x4x16xf32, #tpu.memory_space<vmem>>, vector<1x1x1x16xf32>,
    %126 = vector.extract_strided_slice %117 {offsets = [0, 3, 0], sizes = [1, 1, 16], strides = [1, 1, 1]} : vector<1x7x16xf32> to vector<1x1x16xf32>
    %127 = vector.extract_strided_slice %117 {offsets = [0, 4, 0], sizes = [1, 1, 16], strides = [1, 1, 1]} : vector<1x7x16xf32> to vector<1x1x16xf32>
    %128 = arith.maximumf %126, %127 : vector<1x1x16xf32>
    %129 = vector.shape_cast %128 : vector<1x1x16xf32> to vector<1x1x1x16xf32>
    %c0_79 = arith.constant 0 : index
    %c3_80 = arith.constant 3 : index
    %c2_81 = arith.constant 2 : index
    %c0_82 = arith.constant 0 : index
    %130 = vector.load %arg10[%c0_79, %c3_80, %c2_81, %c0_82] : memref<1x4x4x16xf32, #tpu.memory_space<vmem>>, vector<1x1x1x16xf32>
    tpu.vector_store %arg10[%c0_79, %c3_80, %c2_81, %c0_82], %129 {strides = array<i32>} : memref<1x4x4x16xf32, #tpu.memory_space<vmem>>, vector<1x1x1x16xf32>,
    %131 = vector.extract_strided_slice %117 {offsets = [0, 5, 0], sizes = [1, 1, 16], strides = [1, 1, 1]} : vector<1x7x16xf32> to vector<1x1x16xf32>
    %132 = vector.extract_strided_slice %117 {offsets = [0, 6, 0], sizes = [1, 1, 16], strides = [1, 1, 1]} : vector<1x7x16xf32> to vector<1x1x16xf32>
    %133 = arith.maximumf %131, %132 : vector<1x1x16xf32>
    %134 = vector.shape_cast %133 : vector<1x1x16xf32> to vector<1x1x1x16xf32>
    %c0_83 = arith.constant 0 : index
    %c3_84 = arith.constant 3 : index
    %c3_85 = arith.constant 3 : index
    %c0_86 = arith.constant 0 : index
    %135 = vector.load %arg10[%c0_83, %c3_84, %c3_85, %c0_86] : memref<1x4x4x16xf32, #tpu.memory_space<vmem>>, vector<1x1x1x16xf32>
    tpu.vector_store %arg10[%c0_83, %c3_84, %c3_85, %c0_86], %134 {strides = array<i32>} : memref<1x4x4x16xf32, #tpu.memory_space<vmem>>, vector<1x1x1x16xf32>,
    %c0_87 = arith.constant 0 : index
    %c0_88 = arith.constant 0 : index
    %c0_89 = arith.constant 0 : index
    %c0_90 = arith.constant 0 : index
    %136 = vector.load %arg10[%c0_87, %c0_88, %c0_89, %c0_90] : memref<1x4x4x16xf32, #tpu.memory_space<vmem>>, vector<1x4x4x16xf32>
    %137 = vector.extract_strided_slice %136 {offsets = [0, 0, 0, 0], sizes = [1, 2, 2, 16], strides = [1, 1, 1, 1]} : vector<1x4x4x16xf32> to vector<1x2x2x16xf32>
    %138 = vector.shape_cast %137 : vector<1x2x2x16xf32> to vector<4x16xf32>
    %c0_91 = arith.constant 0 : index
    %c0_92 = arith.constant 0 : index
    %c0_93 = arith.constant 0 : index
    %139 = vector.load %arg4[%c0_91, %c0_92, %c0_93] : memref<9x16x64xf32, #tpu.memory_space<vmem>>, vector<1x16x64xf32>
    %140 = vector.shape_cast %139 : vector<1x16x64xf32> to vector<16x64xf32>
    %cst_94 = arith.constant dense<0.000000e+00> : vector<4x64xf32>
    %141 = tpu.matmul %138, %140, %cst_94 {dimension_numbers = #tpu.dot_dimension_numbers<[1], [0], [0], [1], [0, 0, 1, 1], [], []>} : vector<4x16xf32>, vector<16x64xf32>, vector<4x64xf32> -> vector<4x64xf32>
    %142 = vector.extract_strided_slice %136 {offsets = [0, 0, 1, 0], sizes = [1, 2, 2, 16], strides = [1, 1, 1, 1]} : vector<1x4x4x16xf32> to vector<1x2x2x16xf32>
    %143 = vector.shape_cast %142 : vector<1x2x2x16xf32> to vector<4x16xf32>
    %c1_95 = arith.constant 1 : index
    %c0_96 = arith.constant 0 : index
    %c0_97 = arith.constant 0 : index
    %144 = vector.load %arg4[%c1_95, %c0_96, %c0_97] : memref<9x16x64xf32, #tpu.memory_space<vmem>>, vector<1x16x64xf32>
    %145 = vector.shape_cast %144 : vector<1x16x64xf32> to vector<16x64xf32>
    %cst_98 = arith.constant dense<0.000000e+00> : vector<4x64xf32>
    %146 = tpu.matmul %143, %145, %cst_98 {dimension_numbers = #tpu.dot_dimension_numbers<[1], [0], [0], [1], [0, 0, 1, 1], [], []>} : vector<4x16xf32>, vector<16x64xf32>, vector<4x64xf32> -> vector<4x64xf32>
    %147 = arith.addf %141, %146 : vector<4x64xf32>
    %148 = vector.extract_strided_slice %136 {offsets = [0, 0, 2, 0], sizes = [1, 2, 2, 16], strides = [1, 1, 1, 1]} : vector<1x4x4x16xf32> to vector<1x2x2x16xf32>
    %149 = vector.shape_cast %148 : vector<1x2x2x16xf32> to vector<4x16xf32>
    %c2_99 = arith.constant 2 : index
    %c0_100 = arith.constant 0 : index
    %c0_101 = arith.constant 0 : index
    %150 = vector.load %arg4[%c2_99, %c0_100, %c0_101] : memref<9x16x64xf32, #tpu.memory_space<vmem>>, vector<1x16x64xf32>
    %151 = vector.shape_cast %150 : vector<1x16x64xf32> to vector<16x64xf32>
    %cst_102 = arith.constant dense<0.000000e+00> : vector<4x64xf32>
    %152 = tpu.matmul %149, %151, %cst_102 {dimension_numbers = #tpu.dot_dimension_numbers<[1], [0], [0], [1], [0, 0, 1, 1], [], []>} : vector<4x16xf32>, vector<16x64xf32>, vector<4x64xf32> -> vector<4x64xf32>
    %153 = arith.addf %147, %152 : vector<4x64xf32>
    %154 = vector.extract_strided_slice %136 {offsets = [0, 1, 0, 0], sizes = [1, 2, 2, 16], strides = [1, 1, 1, 1]} : vector<1x4x4x16xf32> to vector<1x2x2x16xf32>
    %155 = vector.shape_cast %154 : vector<1x2x2x16xf32> to vector<4x16xf32>
    %c3_103 = arith.constant 3 : index
    %c0_104 = arith.constant 0 : index
    %c0_105 = arith.constant 0 : index
    %156 = vector.load %arg4[%c3_103, %c0_104, %c0_105] : memref<9x16x64xf32, #tpu.memory_space<vmem>>, vector<1x16x64xf32>
    %157 = vector.shape_cast %156 : vector<1x16x64xf32> to vector<16x64xf32>
    %cst_106 = arith.constant dense<0.000000e+00> : vector<4x64xf32>
    %158 = tpu.matmul %155, %157, %cst_106 {dimension_numbers = #tpu.dot_dimension_numbers<[1], [0], [0], [1], [0, 0, 1, 1], [], []>} : vector<4x16xf32>, vector<16x64xf32>, vector<4x64xf32> -> vector<4x64xf32>
    %159 = arith.addf %153, %158 : vector<4x64xf32>
    %160 = vector.extract_strided_slice %136 {offsets = [0, 1, 1, 0], sizes = [1, 2, 2, 16], strides = [1, 1, 1, 1]} : vector<1x4x4x16xf32> to vector<1x2x2x16xf32>
    %161 = vector.shape_cast %160 : vector<1x2x2x16xf32> to vector<4x16xf32>
    %c4 = arith.constant 4 : index
    %c0_107 = arith.constant 0 : index
    %c0_108 = arith.constant 0 : index
    %162 = vector.load %arg4[%c4, %c0_107, %c0_108] : memref<9x16x64xf32, #tpu.memory_space<vmem>>, vector<1x16x64xf32>
    %163 = vector.shape_cast %162 : vector<1x16x64xf32> to vector<16x64xf32>
    %cst_109 = arith.constant dense<0.000000e+00> : vector<4x64xf32>
    %164 = tpu.matmul %161, %163, %cst_109 {dimension_numbers = #tpu.dot_dimension_numbers<[1], [0], [0], [1], [0, 0, 1, 1], [], []>} : vector<4x16xf32>, vector<16x64xf32>, vector<4x64xf32> -> vector<4x64xf32>
    %165 = arith.addf %159, %164 : vector<4x64xf32>
    %166 = vector.extract_strided_slice %136 {offsets = [0, 1, 2, 0], sizes = [1, 2, 2, 16], strides = [1, 1, 1, 1]} : vector<1x4x4x16xf32> to vector<1x2x2x16xf32>
    %167 = vector.shape_cast %166 : vector<1x2x2x16xf32> to vector<4x16xf32>
    %c5 = arith.constant 5 : index
    %c0_110 = arith.constant 0 : index
    %c0_111 = arith.constant 0 : index
    %168 = vector.load %arg4[%c5, %c0_110, %c0_111] : memref<9x16x64xf32, #tpu.memory_space<vmem>>, vector<1x16x64xf32>
    %169 = vector.shape_cast %168 : vector<1x16x64xf32> to vector<16x64xf32>
    %cst_112 = arith.constant dense<0.000000e+00> : vector<4x64xf32>
    %170 = tpu.matmul %167, %169, %cst_112 {dimension_numbers = #tpu.dot_dimension_numbers<[1], [0], [0], [1], [0, 0, 1, 1], [], []>} : vector<4x16xf32>, vector<16x64xf32>, vector<4x64xf32> -> vector<4x64xf32>
    %171 = arith.addf %165, %170 : vector<4x64xf32>
    %172 = vector.extract_strided_slice %136 {offsets = [0, 2, 0, 0], sizes = [1, 2, 2, 16], strides = [1, 1, 1, 1]} : vector<1x4x4x16xf32> to vector<1x2x2x16xf32>
    %173 = vector.shape_cast %172 : vector<1x2x2x16xf32> to vector<4x16xf32>
    %c6 = arith.constant 6 : index
    %c0_113 = arith.constant 0 : index
    %c0_114 = arith.constant 0 : index
    %174 = vector.load %arg4[%c6, %c0_113, %c0_114] : memref<9x16x64xf32, #tpu.memory_space<vmem>>, vector<1x16x64xf32>
    %175 = vector.shape_cast %174 : vector<1x16x64xf32> to vector<16x64xf32>
    %cst_115 = arith.constant dense<0.000000e+00> : vector<4x64xf32>
    %176 = tpu.matmul %173, %175, %cst_115 {dimension_numbers = #tpu.dot_dimension_numbers<[1], [0], [0], [1], [0, 0, 1, 1], [], []>} : vector<4x16xf32>, vector<16x64xf32>, vector<4x64xf32> -> vector<4x64xf32>
    %177 = arith.addf %171, %176 : vector<4x64xf32>
    %178 = vector.extract_strided_slice %136 {offsets = [0, 2, 1, 0], sizes = [1, 2, 2, 16], strides = [1, 1, 1, 1]} : vector<1x4x4x16xf32> to vector<1x2x2x16xf32>
    %179 = vector.shape_cast %178 : vector<1x2x2x16xf32> to vector<4x16xf32>
    %c7 = arith.constant 7 : index
    %c0_116 = arith.constant 0 : index
    %c0_117 = arith.constant 0 : index
    %180 = vector.load %arg4[%c7, %c0_116, %c0_117] : memref<9x16x64xf32, #tpu.memory_space<vmem>>, vector<1x16x64xf32>
    %181 = vector.shape_cast %180 : vector<1x16x64xf32> to vector<16x64xf32>
    %cst_118 = arith.constant dense<0.000000e+00> : vector<4x64xf32>
    %182 = tpu.matmul %179, %181, %cst_118 {dimension_numbers = #tpu.dot_dimension_numbers<[1], [0], [0], [1], [0, 0, 1, 1], [], []>} : vector<4x16xf32>, vector<16x64xf32>, vector<4x64xf32> -> vector<4x64xf32>
    %183 = arith.addf %177, %182 : vector<4x64xf32>
    %184 = vector.extract_strided_slice %136 {offsets = [0, 2, 2, 0], sizes = [1, 2, 2, 16], strides = [1, 1, 1, 1]} : vector<1x4x4x16xf32> to vector<1x2x2x16xf32>
    %185 = vector.shape_cast %184 : vector<1x2x2x16xf32> to vector<4x16xf32>
    %c8 = arith.constant 8 : index
    %c0_119 = arith.constant 0 : index
    %c0_120 = arith.constant 0 : index
    %186 = vector.load %arg4[%c8, %c0_119, %c0_120] : memref<9x16x64xf32, #tpu.memory_space<vmem>>, vector<1x16x64xf32>
    %187 = vector.shape_cast %186 : vector<1x16x64xf32> to vector<16x64xf32>
    %cst_121 = arith.constant dense<0.000000e+00> : vector<4x64xf32>
    %188 = tpu.matmul %185, %187, %cst_121 {dimension_numbers = #tpu.dot_dimension_numbers<[1], [0], [0], [1], [0, 0, 1, 1], [], []>} : vector<4x16xf32>, vector<16x64xf32>, vector<4x64xf32> -> vector<4x64xf32>
    %189 = arith.addf %183, %188 : vector<4x64xf32>
    %c0_122 = arith.constant 0 : index
    %c0_123 = arith.constant 0 : index
    %190 = vector.load %arg5[%c0_122, %c0_123] : memref<1x64xf32, #tpu.memory_space<vmem>>, vector<1x64xf32>
    %191 = vector.broadcast %190 : vector<1x64xf32> to vector<4x64xf32>
    %192 = arith.addf %189, %191 : vector<4x64xf32>
    %cst_124 = arith.constant 0.000000e+00 : f32
    %193 = vector.broadcast %cst_124 : f32 to vector<4x64xf32>
    %194 = arith.maximumf %192, %193 : vector<4x64xf32>
    %195 = vector.shape_cast %194 : vector<4x64xf32> to vector<1x4x64xf32>
    %cst_125 = arith.constant dense<0xFF800000> : vector<1x64xf32>
    %196 = vector.multi_reduction <maximumf>, %195, %cst_125 [1] : vector<1x4x64xf32> to vector<1x64xf32>
    %c0_126 = arith.constant 0 : index
    %c0_127 = arith.constant 0 : index
    %197 = vector.load %arg6[%c0_126, %c0_127] : memref<64x5xf32, #tpu.memory_space<vmem>>, vector<64x5xf32>
    %cst_128 = arith.constant dense<0.000000e+00> : vector<1x5xf32>
    %198 = tpu.matmul %196, %197, %cst_128 {dimension_numbers = #tpu.dot_dimension_numbers<[1], [0], [0], [1], [0, 0, 1, 1], [], []>} : vector<1x64xf32>, vector<64x5xf32>, vector<1x5xf32> -> vector<1x5xf32>
    %c0_129 = arith.constant 0 : index
    %c0_130 = arith.constant 0 : index
    %199 = vector.load %arg7[%c0_129, %c0_130] : memref<1x5xf32, #tpu.memory_space<vmem>>, vector<1x5xf32>
    %200 = arith.addf %198, %199 : vector<1x5xf32>
    %c0_131 = arith.constant 0 : index
    %c0_132 = arith.constant 0 : index
    %c0_133 = arith.constant 0 : index
    %201 = vector.load %arg8[%c0_131, %c0_132, %c0_133] : memref<1x1x5xf32, #tpu.memory_space<vmem>>, vector<1x1x5xf32>
    %202 = vector.shape_cast %201 : vector<1x1x5xf32> to vector<1x5xf32>
    %203 = vector.shape_cast %200 : vector<1x5xf32> to vector<1x1x5xf32>
    tpu.vector_store %arg8[%c0_131, %c0_132, %c0_133], %203 {strides = array<i32>} : memref<1x1x5xf32, #tpu.memory_space<vmem>>, vector<1x1x5xf32>,
    return
  }
  func.func @transform_0(%arg0: i32) -> (i32, i32, i32, i32) {
    %c0_i32 = arith.constant 0 : i32
    %c0_i32_0 = arith.constant 0 : i32
    %c0_i32_1 = arith.constant 0 : i32
    %c0_i32_2 = arith.constant 0 : i32
    return %arg0, %c0_i32, %c0_i32_0, %c0_i32_1 : i32, i32, i32, i32
  }
  func.func @transform_1(%arg0: i32) -> (i32, i32) {
    %c0_i32 = arith.constant 0 : i32
    %c0_i32_0 = arith.constant 0 : i32
    %c0_i32_1 = arith.constant 0 : i32
    return %c0_i32, %c0_i32_0 : i32, i32
  }
  func.func @transform_2(%arg0: i32) -> (i32, i32) {
    %c0_i32 = arith.constant 0 : i32
    %c0_i32_0 = arith.constant 0 : i32
    %c0_i32_1 = arith.constant 0 : i32
    return %c0_i32, %c0_i32_0 : i32, i32
  }
  func.func @transform_3(%arg0: i32) -> (i32, i32, i32) {
    %c0_i32 = arith.constant 0 : i32
    %c0_i32_0 = arith.constant 0 : i32
    %c0_i32_1 = arith.constant 0 : i32
    %c0_i32_2 = arith.constant 0 : i32
    return %c0_i32, %c0_i32_0, %c0_i32_1 : i32, i32, i32
  }
  func.func @transform_4(%arg0: i32) -> (i32, i32) {
    %c0_i32 = arith.constant 0 : i32
    %c0_i32_0 = arith.constant 0 : i32
    %c0_i32_1 = arith.constant 0 : i32
    return %c0_i32, %c0_i32_0 : i32, i32
  }
  func.func @transform_5(%arg0: i32) -> (i32, i32) {
    %c0_i32 = arith.constant 0 : i32
    %c0_i32_0 = arith.constant 0 : i32
    %c0_i32_1 = arith.constant 0 : i32
    return %c0_i32, %c0_i32_0 : i32, i32
  }
  func.func @transform_6(%arg0: i32) -> (i32, i32) {
    %c0_i32 = arith.constant 0 : i32
    %c0_i32_0 = arith.constant 0 : i32
    %c0_i32_1 = arith.constant 0 : i32
    return %c0_i32, %c0_i32_0 : i32, i32
  }
  func.func @transform_7(%arg0: i32) -> (i32, i32, i32) {
    %c0_i32 = arith.constant 0 : i32
    %c0_i32_0 = arith.constant 0 : i32
    %c0_i32_1 = arith.constant 0 : i32
    return %arg0, %c0_i32, %c0_i32_0 : i32, i32, i32
  }
}

</mosaic_0001>

<llo_original>
// kernel: cnn_classifier_forward.1
$region0: #{cnn_classifier_forward.1}
  #allocation0 [shape = 'u32[]', space=smem, size = 0x4, offset = 0x4, fixed_abs, tag = 'smem constant byte address 0x4 - core index']
  #allocation1 [shape = 'u32[144,128]{1,0:T(1,128)}', space=vmem, size = 0x12000, scoped, tag = 'internal scratch']
  #allocation2 [shape = 'f32[1,10,8,200]{3,2,1,0:T(8,128)}', space=vmem, size = 0x14000, scoped, tag = 'scratch operand']
  #allocation3 [shape = 'f32[1,4,4,16]{3,2,1,0:T(4,128)}', space=vmem, size = 0x2000, scoped, tag = 'scratch operand']
  %s0 = inlined_call_operand.hbm [shape: f32[2,12,8,200], index: 0, kind: input, shape index: {}]
  %s1 = inlined_call_operand.vmem [shape: f32[200,48], index: 1, kind: input, shape index: {}]
  %s2 = inlined_call_operand.vmem [shape: f32[1,16], index: 2, kind: input, shape index: {}]
  %s3 = inlined_call_operand.vmem [shape: f32[9,16,64], index: 3, kind: input, shape index: {}]
  %s4 = inlined_call_operand.vmem [shape: f32[1,64], index: 4, kind: input, shape index: {}]
  %s5 = inlined_call_operand.vmem [shape: f32[64,5], index: 5, kind: input, shape index: {}]
  %s6 = inlined_call_operand.vmem [shape: f32[1,5], index: 6, kind: input, shape index: {}]
  %s7 = inlined_call_operand.hbm [shape: f32[2,1,5], index: 7, kind: output, shape index: {}]
  %s8 = sld [smem:[#allocation0]]
  $region65: #{cnn_classifier_forward.1} parent=0
    _
  %s10 = ssub.s32 1, %s8
  %s11 = scalar_select 0, %s10, %s8
  $region1: #{cnn_classifier_forward.1} parent=0
    #allocation4 [shape = 'u8[147456]{0}', space=vmem, size = 0x24000, scoped, tag = 'input window, operand 0']
    #allocation5 [shape = 's32[2]{0}', space=sflag, size = 0x8, scoped, tag = 'scoped memory for cnn_classifier_forward.1']
    #allocation6 [shape = 's32[2]{0}', space=sflag, size = 0x8, scoped, tag = 'scoped memory for cnn_classifier_forward.1']
    #allocation7 [shape = 'u8[1024]{0}', space=vmem, size = 0x400, scoped, tag = 'output window, operand 0']
    %12 = vsyncpa [#allocation5], 0
    %s13 = scalar_lea.sflag [#allocation5], 1
    %14 = vsyncpa %s13, 0
    %15 = vsyncpa [#allocation6], 0
    %s16 = scalar_lea.sflag [#allocation6], 1
    %17 = vsyncpa %s16, 0
    loop: start=0, step=1, limit=4
    $region2: #{cnn_classifier_forward.1} parent=1 // loop_pre_header
      _
    $region3: #{cnn_classifier_forward.1} parent=1 // loop_header
      %s19 = sphi 0, %s23
      %p20 = scmp.ge.s32.totalorder %s19, 4
      %s29 = sphi 0, %s31
      %s32 = sphi 0, %s29
      %s33 = sphi 0, %s32
      %s49 = sphi 0, %s33
      %s53 = sphi 0, %s53
      %s55 = sphi 0, %s53
      %s56 = sphi 0, %s55
      %s70 = sphi 0, %s56
      %s74 = sphi 0, %s74
      %s76 = sphi 0, %s74
      %s77 = sphi 0, %s76
      %s91 = sphi 0, %s77
      %s95 = sphi 0, %s95
      %s97 = sphi 0, %s95
      %s98 = sphi 0, %s97
      %s112 = sphi 0, %s98
      %s116 = sphi 0, %s116
      %s118 = sphi 0, %s116
      %s119 = sphi 0, %s118
      %s133 = sphi 0, %s119
      %s137 = sphi 0, %s137
      %s139 = sphi 0, %s137
      %s140 = sphi 0, %s139
      %s154 = sphi 0, %s140
      %s158 = sphi 0, %s158
      %s160 = sphi 0, %s158
      %s161 = sphi 0, %s160
      %s175 = sphi 0, %s161
      %s181 = sphi 0, %s183
      %s184 = sphi 0, %s181
      %s185 = sphi 0, %s184
      %s201 = sphi 0, %s185
    $region4: #{cnn_classifier_forward.1} parent=1 // loop_header_branch
      %22 = sbr.rel (%p20) target = $region8
    $region5: #{cnn_classifier_forward.1} parent=1 // loop_body
      %s24 = ssub.s32 %s19, 1
      %s25 = ssub.s32 %s19, 2
      %s26 = sadd.s32 %s19, 1
      %s27 = ssub.s32 %s19, %s26
      %p28 = scmp.eq.s32.totalorder %s27, 0
      %s30 = sadd.s32 %s29, 1
      %s31 = scalar_select %p28, %s29, %s30
      %p34 = pneg %p28
      %p35 = scmp.eq.s32.totalorder %s19, 1
      %p36 = por %p34, %p35
      %p37 = scmp.ne.s32.totalorder %s29, %s32
      %p38 = scmp.eq.s32.totalorder %s19, 0
      %p39 = por %p37, %p38
      %p40 = scmp.ne.s32.totalorder %s29, %s32
      %p41 = scmp.eq.s32.totalorder %s24, 1
      %p42 = por %p40, %p41
      %p43 = scmp.ne.s32.totalorder %s32, %s33
      %p44 = scmp.eq.s32.totalorder %s24, 0
      %p45 = por %p43, %p44
      %p46 = scmp.ne.s32.totalorder %s32, %s33
      %p47 = scmp.eq.s32.totalorder %s25, 1
      %p48 = por %p46, %p47
      %p50 = scmp.ne.s32.totalorder %s33, %s49
      %p51 = scmp.eq.s32.totalorder %s25, 0
      %p52 = por %p50, %p51
      %s54 = sadd.s32 %s53, 1
      %p57 = scmp.eq.s32.totalorder %s19, 1
      %p58 = scmp.ne.s32.totalorder %s53, %s55
      %p59 = scmp.eq.s32.totalorder %s19, 0
      %p60 = por %p58, %p59
      %p61 = scmp.ne.s32.totalorder %s53, %s55
      %p62 = scmp.eq.s32.totalorder %s24, 1
      %p63 = por %p61, %p62
      %p64 = scmp.ne.s32.totalorder %s55, %s56
      %p65 = scmp.eq.s32.totalorder %s24, 0
      %p66 = por %p64, %p65
      %p67 = scmp.ne.s32.totalorder %s55, %s56
      %p68 = scmp.eq.s32.totalorder %s25, 1
      %p69 = por %p67, %p68
      %p71 = scmp.ne.s32.totalorder %s56, %s70
      %p72 = scmp.eq.s32.totalorder %s25, 0
      %p73 = por %p71, %p72
      %s75 = sadd.s32 %s74, 1
      %p78 = scmp.eq.s32.totalorder %s19, 1
      %p79 = scmp.ne.s32.totalorder %s74, %s76
      %p80 = scmp.eq.s32.totalorder %s19, 0
      %p81 = por %p79, %p80
      %p82 = scmp.ne.s32.totalorder %s74, %s76
      %p83 = scmp.eq.s32.totalorder %s24, 1
      %p84 = por %p82, %p83
      %p85 = scmp.ne.s32.totalorder %s76, %s77
      %p86 = scmp.eq.s32.totalorder %s24, 0
      %p87 = por %p85, %p86
      %p88 = scmp.ne.s32.totalorder %s76, %s77
      %p89 = scmp.eq.s32.totalorder %s25, 1
      %p90 = por %p88, %p89
      %p92 = scmp.ne.s32.totalorder %s77, %s91
      %p93 = scmp.eq.s32.totalorder %s25, 0
      %p94 = por %p92, %p93
      %s96 = sadd.s32 %s95, 1
      %p99 = scmp.eq.s32.totalorder %s19, 1
      %p100 = scmp.ne.s32.totalorder %s95, %s97
      %p101 = scmp.eq.s32.totalorder %s19, 0
      %p102 = por %p100, %p101
      %p103 = scmp.ne.s32.totalorder %s95, %s97
      %p104 = scmp.eq.s32.totalorder %s24, 1
      %p105 = por %p103, %p104
      %p106 = scmp.ne.s32.totalorder %s97, %s98
      %p107 = scmp.eq.s32.totalorder %s24, 0
      %p108 = por %p106, %p107
      %p109 = scmp.ne.s32.totalorder %s97, %s98
      %p110 = scmp.eq.s32.totalorder %s25, 1
      %p111 = por %p109, %p110
      %p113 = scmp.ne.s32.totalorder %s98, %s112
      %p114 = scmp.eq.s32.totalorder %s25, 0
      %p115 = por %p113, %p114
      %s117 = sadd.s32 %s116, 1
      %p120 = scmp.eq.s32.totalorder %s19, 1
      %p121 = scmp.ne.s32.totalorder %s116, %s118
      %p122 = scmp.eq.s32.totalorder %s19, 0
      %p123 = por %p121, %p122
      %p124 = scmp.ne.s32.totalorder %s116, %s118
      %p125 = scmp.eq.s32.totalorder %s24, 1
      %p126 = por %p124, %p125
      %p127 = scmp.ne.s32.totalorder %s118, %s119
      %p128 = scmp.eq.s32.totalorder %s24, 0
      %p129 = por %p127, %p128
      %p130 = scmp.ne.s32.totalorder %s118, %s119
      %p131 = scmp.eq.s32.totalorder %s25, 1
      %p132 = por %p130, %p131
      %p134 = scmp.ne.s32.totalorder %s119, %s133
      %p135 = scmp.eq.s32.totalorder %s25, 0
      %p136 = por %p134, %p135
      %s138 = sadd.s32 %s137, 1
      %p141 = scmp.eq.s32.totalorder %s19, 1
      %p142 = scmp.ne.s32.totalorder %s137, %s139
      %p143 = scmp.eq.s32.totalorder %s19, 0
      %p144 = por %p142, %p143
      %p145 = scmp.ne.s32.totalorder %s137, %s139
      %p146 = scmp.eq.s32.totalorder %s24, 1
      %p147 = por %p145, %p146
      %p148 = scmp.ne.s32.totalorder %s139, %s140
      %p149 = scmp.eq.s32.totalorder %s24, 0
      %p150 = por %p148, %p149
      %p151 = scmp.ne.s32.totalorder %s139, %s140
      %p152 = scmp.eq.s32.totalorder %s25, 1
      %p153 = por %p151, %p152
      %p155 = scmp.ne.s32.totalorder %s140, %s154
      %p156 = scmp.eq.s32.totalorder %s25, 0
      %p157 = por %p155, %p156
      %s159 = sadd.s32 %s158, 1
      %p162 = scmp.eq.s32.totalorder %s19, 1
      %p163 = scmp.ne.s32.totalorder %s158, %s160
      %p164 = scmp.eq.s32.totalorder %s19, 0
      %p165 = por %p163, %p164
      %p166 = scmp.ne.s32.totalorder %s158, %s160
      %p167 = scmp.eq.s32.totalorder %s24, 1
      %p168 = por %p166, %p167
      %p169 = scmp.ne.s32.totalorder %s160, %s161
      %p170 = scmp.eq.s32.totalorder %s24, 0
      %p171 = por %p169, %p170
      %p172 = scmp.ne.s32.totalorder %s160, %s161
      %p173 = scmp.eq.s32.totalorder %s25, 1
      %p174 = por %p172, %p173
      %p176 = scmp.ne.s32.totalorder %s161, %s175
      %p177 = scmp.eq.s32.totalorder %s25, 0
      %p178 = por %p176, %p177
      %s179 = ssub.s32 %s19, %s26
      %p180 = scmp.eq.s32.totalorder %s179, 0
      %s182 = sadd.s32 %s181, 1
      %s183 = scalar_select %p180, %s181, %s182
      %p186 = pneg %p180
      %p187 = scmp.eq.s32.totalorder %s19, 1
      %p188 = por %p186, %p187
      %p189 = scmp.ne.s32.totalorder %s181, %s184
      %p190 = scmp.eq.s32.totalorder %s19, 0
      %p191 = por %p189, %p190
      %p192 = scmp.ne.s32.totalorder %s181, %s184
      %p193 = scmp.eq.s32.totalorder %s24, 1
      %p194 = por %p192, %p193
      %p195 = scmp.ne.s32.totalorder %s184, %s185
      %p196 = scmp.eq.s32.totalorder %s24, 0
      %p197 = por %p195, %p196
      %p198 = scmp.ne.s32.totalorder %s184, %s185
      %p199 = scmp.eq.s32.totalorder %s25, 1
      %p200 = por %p198, %p199
      %p202 = scmp.ne.s32.totalorder %s185, %s201
      %p203 = scmp.eq.s32.totalorder %s25, 0
      %p204 = por %p202, %p203
      %p205 = scmp.le.s32.totalorder 1, %s19
      %p206 = scmp.lt.s32.totalorder %s19, 3
      %p207 = pnand %p205, %p206
      %p208 = pneg %p207
      // Predicated region
      $region9: #{cnn_classifier_forward.1} parent=5 // pred_check
        _
      $region10: #{cnn_classifier_forward.1} parent=5 // pred_check_branch
        %210 = sbr.rel (%p207) target = $region12
      $region11: #{cnn_classifier_forward.1} parent=5 // pred_region
        %s211 = ssub.s32 %s19, 1
        // Predicated region
        $region13: #{cnn_classifier_forward.1} parent=11 // pred_check
          %p212 = pneg %p66
        $region14: #{cnn_classifier_forward.1} parent=11 // pred_check_branch
          %214 = sbr.rel (%p212) target = $region16
        $region15: #{cnn_classifier_forward.1} parent=11 // pred_region
          _
        $region16: #{cnn_classifier_forward.1} parent=11 // pred_fallthru
          _
        // Predicated region
        $region17: #{cnn_classifier_forward.1} parent=11 // pred_check
          %p215 = pneg %p87
        $region18: #{cnn_classifier_forward.1} parent=11 // pred_check_branch
          %217 = sbr.rel (%p215) target = $region20
        $region19: #{cnn_classifier_forward.1} parent=11 // pred_region
          _
        $region20: #{cnn_classifier_forward.1} parent=11 // pred_fallthru
          _
        // Predicated region
        $region21: #{cnn_classifier_forward.1} parent=11 // pred_check
          %p218 = pneg %p108
        $region22: #{cnn_classifier_forward.1} parent=11 // pred_check_branch
          %220 = sbr.rel (%p218) target = $region24
        $region23: #{cnn_classifier_forward.1} parent=11 // pred_region
          _
        $region24: #{cnn_classifier_forward.1} parent=11 // pred_fallthru
          _
        // Predicated region
        $region25: #{cnn_classifier_forward.1} parent=11 // pred_check
          %p221 = pneg %p129
        $region26: #{cnn_classifier_forward.1} parent=11 // pred_check_branch
          %223 = sbr.rel (%p221) target = $region28
        $region27: #{cnn_classifier_forward.1} parent=11 // pred_region
          _
        $region28: #{cnn_classifier_forward.1} parent=11 // pred_fallthru
          _
        // Predicated region
        $region29: #{cnn_classifier_forward.1} parent=11 // pred_check
          %p224 = pneg %p150
        $region30: #{cnn_classifier_forward.1} parent=11 // pred_check_branch
          %226 = sbr.rel (%p224) target = $region32
        $region31: #{cnn_classifier_forward.1} parent=11 // pred_region
          _
        $region32: #{cnn_classifier_forward.1} parent=11 // pred_fallthru
          _
        // Predicated region
        $region33: #{cnn_classifier_forward.1} parent=11 // pred_check
          %p227 = pneg %p171
        $region34: #{cnn_classifier_forward.1} parent=11 // pred_check_branch
          %229 = sbr.rel (%p227) target = $region36
        $region35: #{cnn_classifier_forward.1} parent=11 // pred_region
          _
        $region36: #{cnn_classifier_forward.1} parent=11 // pred_fallthru
          _
      $region12: #{cnn_classifier_forward.1} parent=5 // pred_fallthru
        _
      %p230 = scmp.lt.s32.totalorder %s19, 2
      // Predicated region
      $region37: #{cnn_classifier_forward.1} parent=5 // pred_check
        %p231 = pneg %p230
      $region38: #{cnn_classifier_forward.1} parent=5 // pred_check_branch
        %233 = sbr.rel (%p231) target = $region40
      $region39: #{cnn_classifier_forward.1} parent=5 // pred_region
        // Predicated region
        $region41: #{cnn_classifier_forward.1} parent=39 // pred_check
          %p234 = pneg %p39
        $region42: #{cnn_classifier_forward.1} parent=39 // pred_check_branch
          %236 = sbr.rel (%p234) target = $region44
        $region43: #{cnn_classifier_forward.1} parent=39 // pred_region
          %s237 = sand.u32 %s29, 1
          %s238 = scalar_lea.sflag [#allocation5], %s237
          %s239 = sand.u32 %s29, 1
          %s240 = smul.addr %s239, 144
          %s241 = scalar_lea.vmem [#allocation4], %s240
          %s243 = ssub.s32 2304, 2304
          %244 = vsyncadd %s238, %s243
          %s245 = smul.addr %s19, 24
          %s246 = smul.addr %s245, 128
          %s247 = scalar_lea.hbm %s0, %s246
          %s248 = sshll.u32 %s241, 4
          %s249 = int_to_ptr.vmem [resolvable:$true] %s248
          %254 = dma.hbm_to_vmem [thread:$0]  %s247, 2304, %s249, %s238, 256, 256, 16
        $region44: #{cnn_classifier_forward.1} parent=39 // pred_fallthru
          _
      $region40: #{cnn_classifier_forward.1} parent=5 // pred_fallthru
        _
      %p255 = scmp.le.s32.totalorder 1, %s19
      %p256 = scmp.lt.s32.totalorder %s19, 3
      %p257 = pnand %p255, %p256
      %p258 = pneg %p257
      // Predicated region
      $region45: #{cnn_classifier_forward.1} parent=5 // pred_check
        _
      $region46: #{cnn_classifier_forward.1} parent=5 // pred_check_branch
        %260 = sbr.rel (%p257) target = $region48
      $region47: #{cnn_classifier_forward.1} parent=5 // pred_region
        %s261 = ssub.s32 %s19, 1
        %s262 = sand.u32 %s32, 1
        %s263 = scalar_lea.sflag [#allocation5], %s262
        %s264 = sand.u32 %s32, 1
        %s265 = smul.addr %s264, 144
        %s266 = scalar_lea.vmem [#allocation4], %s265
        // Predicated region
        $region49: #{cnn_classifier_forward.1} parent=47 // pred_check
          %p267 = pneg %p45
        $region50: #{cnn_classifier_forward.1} parent=47 // pred_check_branch
          %269 = sbr.rel (%p267) target = $region52
        $region51: #{cnn_classifier_forward.1} parent=47 // pred_region
          %270 = dma.done %s263, 2304
        $region52: #{cnn_classifier_forward.1} parent=47 // pred_fallthru
          _
        %s271 = sand.u32 %s32, 1
        %s272 = scalar_lea.sflag [#allocation5], %s271
        %s273 = sand.u32 %s32, 1
        %s274 = smul.addr %s273, 144
        %s275 = scalar_lea.vmem [#allocation4], %s274
        %p276 = pneg %p45
        %p277 = pneg %p42
        %p278 = pneg %p66
        %p279 = pneg %p63
        %p280 = pneg %p87
        %p281 = pneg %p84
        %p282 = pneg %p108
        %p283 = pneg %p105
        %p284 = pneg %p129
        %p285 = pneg %p126
        %p286 = pneg %p150
        %p287 = pneg %p147
        %p288 = pneg %p171
        %p289 = pneg %p168
        %p290 = pneg %p197
        %p291 = pneg %p194
        %s292 = sand.u32 %s184, 1
        %s293 = scalar_lea.sflag [#allocation6], %s292
        %s294 = sand.u32 %s184, 1
        %s295 = scalar_lea.vmem [#allocation7], %s294
        %296 = vst [vmem:[#allocation2] sm:$0xff] 0.0
        %vm297 = vcmask 588800
        %298 = vst.msk [vmem:[#allocation2 + $0x8] sm:$0xff] %vm297, 0.0
        %v299 = vlaneseq
        %vm300 = vcmp.ge.s32.totalorder %v299, 0
        %vm301 = vcmp.lt.s32.totalorder %v299, 200
        %vm302 = vmand %vm300, %vm301
        %303 = vst.msk [vmem:[#allocation2] ss:$8 sm:$0x3] %vm302, 0.0
        %304 = vst.msk [vmem:[#allocation2] ss:$8 sm:$0x0] %vm302, 0.0
        %s305 = scalar_lea.vmem [#allocation2], 16
        %306 = vst.msk [vmem:[%s305] ss:$8 sm:$0x3] %vm302, 0.0
        %307 = vst.msk [vmem:[%s305] ss:$8 sm:$0x0] %vm302, 0.0
        %s308 = scalar_lea.vmem [#allocation2], 32
        %309 = vst.msk [vmem:[%s308] ss:$8 sm:$0x3] %vm302, 0.0
        %310 = vst.msk [vmem:[%s308] ss:$8 sm:$0x0] %vm302, 0.0
        %s311 = scalar_lea.vmem [#allocation2], 48
        %312 = vst.msk [vmem:[%s311] ss:$8 sm:$0x3] %vm302, 0.0
        %313 = vst.msk [vmem:[%s311] ss:$8 sm:$0x0] %vm302, 0.0
        %s314 = scalar_lea.vmem [#allocation2], 64
        %315 = vst.msk [vmem:[%s314] ss:$8 sm:$0x3] %vm302, 0.0
        %316 = vst.msk [vmem:[%s314] ss:$8 sm:$0x0] %vm302, 0.0
        %s317 = scalar_lea.vmem [#allocation2], 80
        %318 = vst.msk [vmem:[%s317] ss:$8 sm:$0x3] %vm302, 0.0
        %319 = vst.msk [vmem:[%s317] ss:$8 sm:$0x0] %vm302, 0.0
        %s320 = scalar_lea.vmem [#allocation2], 96
        %321 = vst.msk [vmem:[%s320] ss:$8 sm:$0x3] %vm302, 0.0
        %322 = vst.msk [vmem:[%s320] ss:$8 sm:$0x0] %vm302, 0.0
        %s323 = scalar_lea.vmem [#allocation2], 112
        %324 = vst.msk [vmem:[%s323] ss:$8 sm:$0x3] %vm302, 0.0
        %325 = vst.msk [vmem:[%s323] ss:$8 sm:$0x0] %vm302, 0.0
        %s326 = scalar_lea.vmem [#allocation2], 128
        %327 = vst.msk [vmem:[%s326] ss:$8 sm:$0x3] %vm302, 0.0
        %328 = vst.msk [vmem:[%s326] ss:$8 sm:$0x0] %vm302, 0.0
        %s329 = scalar_lea.vmem [#allocation2], 144
        %330 = vst.msk [vmem:[%s329] ss:$8 sm:$0x3] %vm302, 0.0
        %331 = vst.msk [vmem:[%s329] ss:$8 sm:$0x0] %vm302, 0.0
        %v332 = vld [vmem:[%s266] sm:$0x7f]
        %v333 = vld [vmem:[%s266 + $0x8] sm:$0x7f]
        %v334 = vld [vmem:[%s266 + $0x10] sm:$0x7f]
        %v335 = vld [vmem:[%s266 + $0x18] sm:$0x7f]
        %v336 = vld [vmem:[%s266 + $0x20] sm:$0x7f]
        %v337 = vld [vmem:[%s266 + $0x28] sm:$0x7f]
        %v338 = vld [vmem:[%s266 + $0x30] sm:$0x7f]
        %v339 = vld [vmem:[%s266 + $0x38] sm:$0x7f]
        %v340 = vld [vmem:[%s266 + $0x40] sm:$0x7f]
        %v341 = vld [vmem:[%s266 + $0x48] sm:$0x7f]
        %v342 = vld [vmem:[%s266 + $0x50] sm:$0x7f]
        %v343 = vld [vmem:[%s266 + $0x58] sm:$0x7f]
        %v344 = vld [vmem:[%s266 + $0x60] sm:$0x7f]
        %v345 = vld [vmem:[%s266 + $0x68] sm:$0x7f]
        %v346 = vld [vmem:[%s266 + $0x70] sm:$0x7f]
        %v347 = vld [vmem:[%s266 + $0x78] sm:$0x7f]
        %v348 = vld [vmem:[%s266 + $0x80] sm:$0x7f]
        %v349 = vld [vmem:[%s266 + $0x88] sm:$0x7f]
        %v368 = vrot.slane %v332, 7
        %v369 = vrot.slane %v333, 7
        %v370 = vrot.slane %v334, 7
        %v371 = vrot.slane %v335, 7
        %v372 = vrot.slane %v336, 7
        %v373 = vrot.slane %v337, 7
        %v374 = vrot.slane %v338, 7
        %v375 = vrot.slane %v339, 7
        %v376 = vrot.slane %v340, 7
        %v377 = vrot.slane %v341, 7
        %v378 = vrot.slane %v342, 7
        %v379 = vrot.slane %v343, 7
        %v380 = vrot.slane %v344, 7
        %v381 = vrot.slane %v345, 7
        %v382 = vrot.slane %v346, 7
        %v383 = vrot.slane %v347, 7
        %v384 = vrot.slane %v348, 7
        %v385 = vrot.slane %v349, 7
        %s404 = scalar_lea.vmem [#allocation2], 16
        %405 = vst [vmem:[%s404] sm:$0xfe] %v368
        %vm406 = vcmask 588801
        %407 = vst.msk [vmem:[%s404 + $0x8] sm:$0xfe] %vm406, %v369
        %408 = vst [vmem:[%s404 + $0x10] sm:$0xfe] %v370
        %409 = vst.msk [vmem:[%s404 + $0x18] sm:$0xfe] %vm406, %v371
        %410 = vst [vmem:[%s404 + $0x20] sm:$0xfe] %v372
        %411 = vst.msk [vmem:[%s404 + $0x28] sm:$0xfe] %vm406, %v373
        %412 = vst [vmem:[%s404 + $0x30] sm:$0xfe] %v374
        %413 = vst.msk [vmem:[%s404 + $0x38] sm:$0xfe] %vm406, %v375
        %414 = vst [vmem:[%s404 + $0x40] sm:$0xfe] %v376
        %415 = vst.msk [vmem:[%s404 + $0x48] sm:$0xfe] %vm406, %v377
        %416 = vst [vmem:[%s404 + $0x50] sm:$0xfe] %v378
        %417 = vst.msk [vmem:[%s404 + $0x58] sm:$0xfe] %vm406, %v379
        %418 = vst [vmem:[%s404 + $0x60] sm:$0xfe] %v380
        %419 = vst.msk [vmem:[%s404 + $0x68] sm:$0xfe] %vm406, %v381
        %420 = vst [vmem:[%s404 + $0x70] sm:$0xfe] %v382
        %421 = vst.msk [vmem:[%s404 + $0x78] sm:$0xfe] %vm406, %v383
        %422 = vst [vmem:[%s404 + $0x80] sm:$0xfe] %v384
        %423 = vst.msk [vmem:[%s404 + $0x88] sm:$0xfe] %vm406, %v385
        %v424 = vld [vmem:[#allocation2] sm:$0xff]
        %v425 = vld [vmem:[#allocation2 + $0x8] sm:$0xff]
        %v426 = vld [vmem:[#allocation2 + $0x10] sm:$0xff]
        %v427 = vld [vmem:[#allocation2 + $0x18] sm:$0xff]
        %v428 = vld [vmem:[#allocation2 + $0x20] sm:$0xff]
        %v429 = vld [vmem:[#allocation2 + $0x28] sm:$0xff]
        %v430 = vld [vmem:[#allocation2 + $0x30] sm:$0xff]
        %v431 = vld [vmem:[#allocation2 + $0x38] sm:$0xff]
        %v432 = vld [vmem:[#allocation2 + $0x40] sm:$0xff]
        %v433 = vld [vmem:[#allocation2 + $0x48] sm:$0xff]
        %v434 = vld [vmem:[#allocation2 + $0x50] sm:$0xff]
        %v435 = vld [vmem:[#allocation2 + $0x58] sm:$0xff]
        %v436 = vld [vmem:[#allocation2 + $0x60] sm:$0xff]
        %v437 = vld [vmem:[#allocation2 + $0x68] sm:$0xff]
        %v438 = vld [vmem:[#allocation2 + $0x70] sm:$0xff]
        %v439 = vld [vmem:[#allocation2 + $0x78] sm:$0xff]
        %v440 = vld [vmem:[#allocation2 + $0x80] sm:$0xff]
        %v441 = vld [vmem:[#allocation2 + $0x88] sm:$0xff]
        %v442 = vld [vmem:[#allocation2 + $0x90] sm:$0xff]
        %v443 = vld [vmem:[#allocation2 + $0x98] sm:$0xff]
        %v444 = vld [vmem:[%s1] sm:$0xff]
        %v445 = vld [vmem:[%s1 + $0x8] sm:$0xff]
        %v446 = vld [vmem:[%s1 + $0x10] sm:$0xff]
        %v447 = vld [vmem:[%s1 + $0x18] sm:$0xff]
        %v448 = vld [vmem:[%s1 + $0x20] sm:$0xff]
        %v449 = vld [vmem:[%s1 + $0x28] sm:$0xff]
        %v450 = vld [vmem:[%s1 + $0x30] sm:$0xff]
        %v451 = vld [vmem:[%s1 + $0x38] sm:$0xff]
        %v452 = vld [vmem:[%s1 + $0x40] sm:$0xff]
        %v453 = vld [vmem:[%s1 + $0x48] sm:$0xff]
        %v454 = vld [vmem:[%s1 + $0x50] sm:$0xff]
        %v455 = vld [vmem:[%s1 + $0x58] sm:$0xff]
        %v456 = vld [vmem:[%s1 + $0x60] sm:$0xff]
        %v457 = vld [vmem:[%s1 + $0x68] sm:$0xff]
        %v458 = vld [vmem:[%s1 + $0x70] sm:$0xff]
        %v459 = vld [vmem:[%s1 + $0x78] sm:$0xff]
        %v460 = vld [vmem:[%s1 + $0x80] sm:$0xff]
        %v461 = vld [vmem:[%s1 + $0x88] sm:$0xff]
        %v462 = vld [vmem:[%s1 + $0x90] sm:$0xff]
        %v463 = vld [vmem:[%s1 + $0x98] sm:$0xff]
        %v464 = vld [vmem:[%s1 + $0xa0] sm:$0xff]
        %v465 = vld [vmem:[%s1 + $0xa8] sm:$0xff]
        %v466 = vld [vmem:[%s1 + $0xb0] sm:$0xff]
        %v467 = vld [vmem:[%s1 + $0xb8] sm:$0xff]
        %v468 = vld [vmem:[%s1 + $0xc0] sm:$0xff]
        %v470 = vsel %vm297, %v425, 0
        %v473 = vsel %vm297, %v427, 0
        %v476 = vsel %vm297, %v429, 0
        %v479 = vsel %vm297, %v431, 0
        %v482 = vsel %vm297, %v433, 0
        %v485 = vsel %vm297, %v435, 0
        %v488 = vsel %vm297, %v437, 0
        %v491 = vsel %vm297, %v439, 0
        %v494 = vsel %vm297, %v441, 0
        %v497 = vsel %vm297, %v443, 0
        %499 = vmatprep.subr.mxu0 0.0
        %500 = vmatpush1.msra.mxu0 %v459
        %501 = vmatprep.subr.mxu0 0.0
        %502 = vmatpush1.msra.mxu0 %v458
        %503 = vmatprep.subr.mxu0 0.0
        %504 = vmatpush1.msra.mxu0 %v457
        %505 = vmatprep.subr.mxu0 0.0
        %506 = vmatpush1.msra.mxu0 %v456
        %507 = vmatprep.subr.mxu0 0.0
        %508 = vmatpush1.msra.mxu0 %v455
        %509 = vmatprep.subr.mxu0 0.0
        %510 = vmatpush1.msra.mxu0 %v454
        %511 = vmatprep.subr.mxu0 0.0
        %512 = vmatpush1.msra.mxu0 %v453
        %513 = vmatprep.subr.mxu0 0.0
        %514 = vmatpush1.msra.mxu0 %v452
        %515 = vmatprep.subr.mxu0 0.0
        %516 = vmatpush1.msra.mxu0 %v451
        %517 = vmatprep.subr.mxu0 0.0
        %518 = vmatpush1.msra.mxu0 %v450
        %519 = vmatprep.subr.mxu0 0.0
        %520 = vmatpush1.msra.mxu0 %v449
        %521 = vmatprep.subr.mxu0 0.0
        %522 = vmatpush1.msra.mxu0 %v448
        %523 = vmatprep.subr.mxu0 0.0
        %524 = vmatpush1.msra.mxu0 %v447
        %525 = vmatprep.subr.mxu0 0.0
        %526 = vmatpush1.msra.mxu0 %v446
        %527 = vmatprep.subr.mxu0 0.0
        %528 = vmatpush1.msra.mxu0 %v445
        %529 = vmatprep.subr.mxu0 0.0
        %530 = vmatpush1.msra.mxu0 %v444
        %531 = vmatprep.subr.mxu0 0.0
        %532 = vmatpush2.msra.mxu0 0.0
        %533 = vmatprep.subr.mxu0 0.0
        %534 = vmatpush2.msra.mxu0 0.0
        %535 = vmatprep.subr.mxu0 0.0
        %536 = vmatpush2.msra.mxu0 0.0
        %537 = vmatprep.subr.mxu0 0.0
        %538 = vmatpush2.msra.mxu0 0.0
        %539 = vmatprep.subr.mxu0 0.0
        %540 = vmatpush2.msra.mxu0 0.0
        %541 = vmatprep.subr.mxu0 0.0
        %542 = vmatpush2.msra.mxu0 0.0
        %543 = vmatprep.subr.mxu0 0.0
        %544 = vmatpush2.msra.mxu0 0.0
        %545 = vmatprep.subr.mxu0 0.0
        %546 = vmatpush2.msra.mxu0 %v468
        %547 = vmatprep.subr.mxu0 0.0
        %548 = vmatpush2.msra.mxu0 %v467
        %549 = vmatprep.subr.mxu0 0.0
        %550 = vmatpush2.msra.mxu0 %v466
        %551 = vmatprep.subr.mxu0 0.0
        %552 = vmatpush2.msra.mxu0 %v465
        %553 = vmatprep.subr.mxu0 0.0
        %554 = vmatpush2.msra.mxu0 %v464
        %555 = vmatprep.subr.mxu0 0.0
        %556 = vmatpush2.msra.mxu0 %v463
        %557 = vmatprep.subr.mxu0 0.0
        %558 = vmatpush2.msra.mxu0 %v462
        %559 = vmatprep.subr.mxu0 0.0
        %560 = vmatpush2.msra.mxu0 %v461
        %561 = vmatprep.subr.mxu0 0.0
        %562 = vmatpush2.msra.mxu0 %v460
        %563 = vmatprep.mubr.f32.mxu0 %v470
        %564 = vmatmul.mubr.f32.gmra.mxu0 %v424
        %v565 = vpop.f32.mrf.mxu0
        %v566 = vadd.f32 0.0, %v565
        %v567 = vpop.f32.mrf.mxu0
        %568 = vmatprep.mubr.f32.mxu0 %v473
        %569 = vmatmul.mubr.f32.gmra.mxu0 %v426
        %v570 = vpop.f32.mrf.mxu0
        %v571 = vadd.f32 0.0, %v570
        %v572 = vpop.f32.mrf.mxu0
        %573 = vmatprep.mubr.f32.mxu0 %v476
        %574 = vmatmul.mubr.f32.gmra.mxu0 %v428
        %v575 = vpop.f32.mrf.mxu0
        %v576 = vadd.f32 0.0, %v575
        %v577 = vpop.f32.mrf.mxu0
        %578 = vmatprep.mubr.f32.mxu0 %v479
        %579 = vmatmul.mubr.f32.gmra.mxu0 %v430
        %v580 = vpop.f32.mrf.mxu0
        %v581 = vadd.f32 0.0, %v580
        %v582 = vpop.f32.mrf.mxu0
        %583 = vmatprep.mubr.f32.mxu0 %v482
        %584 = vmatmul.mubr.f32.gmra.mxu0 %v432
        %v585 = vpop.f32.mrf.mxu0
        %v586 = vadd.f32 0.0, %v585
        %v587 = vpop.f32.mrf.mxu0
        %588 = vmatprep.mubr.f32.mxu0 %v485
        %589 = vmatmul.mubr.f32.gmra.mxu0 %v434
        %v590 = vpop.f32.mrf.mxu0
        %v591 = vadd.f32 0.0, %v590
        %v592 = vpop.f32.mrf.mxu0
        %593 = vmatprep.mubr.f32.mxu0 %v488
        %594 = vmatmul.mubr.f32.gmra.mxu0 %v436
        %v595 = vpop.f32.mrf.mxu0
        %v596 = vadd.f32 0.0, %v595
        %v597 = vpop.f32.mrf.mxu0
        %598 = vmatprep.mubr.f32.mxu0 %v491
        %599 = vmatmul.mubr.f32.gmra.mxu0 %v438
        %v600 = vpop.f32.mrf.mxu0
        %v601 = vadd.f32 0.0, %v600
        %v602 = vpop.f32.mrf.mxu0
        %603 = vmatprep.mubr.f32.mxu0 %v494
        %604 = vmatmul.mubr.f32.gmra.mxu0 %v440
        %v605 = vpop.f32.mrf.mxu0
        %v606 = vadd.f32 0.0, %v605
        %v607 = vpop.f32.mrf.mxu0
        %608 = vmatprep.mubr.f32.mxu0 %v497
        %609 = vmatmul.mubr.f32.gmra.mxu0 %v442
        %v610 = vpop.f32.mrf.mxu0
        %v611 = vadd.f32 0.0, %v610
        %v612 = vpop.f32.mrf.mxu0
        %613 = vdwg.mxu0
        %622 = vrot.lane.b32.xlu0 %v571, 112
        %v623 = vpop.permute.xlu0 %622
        %624 = vrot.lane.b32.xlu0 %v576, 112
        %v625 = vpop.permute.xlu0 %624
        %626 = vrot.lane.b32.xlu0 %v581, 112
        %v627 = vpop.permute.xlu0 %626
        %628 = vrot.lane.b32.xlu0 %v586, 112
        %v629 = vpop.permute.xlu0 %628
        %630 = vrot.lane.b32.xlu0 %v591, 112
        %v631 = vpop.permute.xlu0 %630
        %632 = vrot.lane.b32.xlu0 %v596, 112
        %v633 = vpop.permute.xlu0 %632
        %634 = vrot.lane.b32.xlu0 %v601, 112
        %v635 = vpop.permute.xlu0 %634
        %636 = vrot.lane.b32.xlu0 %v606, 112
        %v637 = vpop.permute.xlu0 %636
        %v646 = vadd.f32 %v566, %v623
        %v647 = vadd.f32 %v571, %v625
        %v648 = vadd.f32 %v576, %v627
        %v649 = vadd.f32 %v581, %v629
        %v650 = vadd.f32 %v586, %v631
        %v651 = vadd.f32 %v591, %v633
        %v652 = vadd.f32 %v596, %v635
        %v653 = vadd.f32 %v601, %v637
        %655 = vrot.lane.b32.xlu0 %v576, 96
        %v656 = vpop.permute.xlu0 %655
        %657 = vrot.lane.b32.xlu0 %v581, 96
        %v658 = vpop.permute.xlu0 %657
        %659 = vrot.lane.b32.xlu0 %v586, 96
        %v660 = vpop.permute.xlu0 %659
        %661 = vrot.lane.b32.xlu0 %v591, 96
        %v662 = vpop.permute.xlu0 %661
        %663 = vrot.lane.b32.xlu0 %v596, 96
        %v664 = vpop.permute.xlu0 %663
        %665 = vrot.lane.b32.xlu0 %v601, 96
        %v666 = vpop.permute.xlu0 %665
        %667 = vrot.lane.b32.xlu0 %v606, 96
        %v668 = vpop.permute.xlu0 %667
        %669 = vrot.lane.b32.xlu0 %v611, 96
        %v670 = vpop.permute.xlu0 %669
        %v679 = vadd.f32 %v646, %v656
        %v680 = vadd.f32 %v647, %v658
        %v681 = vadd.f32 %v648, %v660
        %v682 = vadd.f32 %v649, %v662
        %v683 = vadd.f32 %v650, %v664
        %v684 = vadd.f32 %v651, %v666
        %v685 = vadd.f32 %v652, %v668
        %v686 = vadd.f32 %v653, %v670
        %v687 = vld [vmem:[%s2] sm:$0x1]
        %v689 = vlaneseq
        %v690 = vshrl.u32 %v689, 7
        %v691 = vsub.s32 0, %v690
        %v692 = vrot.slane %v687, %v691
        %v694 = vadd.f32 %v679, %v692
        %v695 = vadd.f32 %v680, %v692
        %v696 = vadd.f32 %v681, %v692
        %v697 = vadd.f32 %v682, %v692
        %v698 = vadd.f32 %v683, %v692
        %v699 = vadd.f32 %v684, %v692
        %v700 = vadd.f32 %v685, %v692
        %v701 = vadd.f32 %v686, %v692
        %v702 = vmax.f32 %v694, 0.0
        %v703 = vmax.f32 %v695, 0.0
        %v704 = vmax.f32 %v696, 0.0
        %v705 = vmax.f32 %v697, 0.0
        %v706 = vmax.f32 %v698, 0.0
        %v707 = vmax.f32 %v699, 0.0
        %v708 = vmax.f32 %v700, 0.0
        %v709 = vmax.f32 %v701, 0.0
        %v710 = vmax.f32 %v702, %v703
        %v712 = vrot.slane %v710, 1
        %v714 = vmax.f32 %v710, %v712
        %vm715 = vcmask 122880
        %716 = vst.msk [vmem:[#allocation3] sm:$0x1] %vm715, %v714
        %v718 = vrot.slane %v714, 1
        %v720 = vmax.f32 %v714, %v718
        %vm721 = vcmask 123905
        %722 = vst.msk [vmem:[#allocation3] sm:$0x2] %vm721, %v720
        %vm723 = vcmask 125955
        %724 = vst.msk [vmem:[#allocation3 - $0x1] sm:$0x8] %vm723, %v720
        %vm725 = vcmask 128005
        %726 = vst.msk [vmem:[#allocation3 - $0x2] sm:$0x20] %vm725, %v720
        %v727 = vmax.f32 %v703, %v704
        %v728 = vmax.f32 %v727, %v705
        %v730 = vrot.slane %v728, 1
        %v732 = vmax.f32 %v728, %v730
        %s733 = scalar_lea.vmem [#allocation3], 4
        %734 = vst.msk [vmem:[%s733] sm:$0x1] %vm715, %v732
        %v736 = vrot.slane %v732, 1
        %v738 = vmax.f32 %v732, %v736
        %739 = vst.msk [vmem:[%s733] sm:$0x2] %vm721, %v738
        %740 = vst.msk [vmem:[%s733 - $0x1] sm:$0x8] %vm723, %v738
        %741 = vst.msk [vmem:[%s733 - $0x2] sm:$0x20] %vm725, %v738
        %v742 = vmax.f32 %v705, %v706
        %v743 = vmax.f32 %v742, %v707
        %v745 = vrot.slane %v743, 1
        %v747 = vmax.f32 %v743, %v745
        %s748 = scalar_lea.vmem [#allocation3], 8
        %749 = vst.msk [vmem:[%s748] sm:$0x1] %vm715, %v747
        %v751 = vrot.slane %v747, 1
        %v753 = vmax.f32 %v747, %v751
        %754 = vst.msk [vmem:[%s748] sm:$0x2] %vm721, %v753
        %755 = vst.msk [vmem:[%s748 - $0x1] sm:$0x8] %vm723, %v753
        %756 = vst.msk [vmem:[%s748 - $0x2] sm:$0x20] %vm725, %v753
        %v757 = vmax.f32 %v707, %v708
        %v758 = vmax.f32 %v757, %v709
        %v760 = vrot.slane %v758, 1
        %v762 = vmax.f32 %v758, %v760
        %s763 = scalar_lea.vmem [#allocation3], 12
        %764 = vst.msk [vmem:[%s763] sm:$0x1] %vm715, %v762
        %v766 = vrot.slane %v762, 1
        %v768 = vmax.f32 %v762, %v766
        %769 = vst.msk [vmem:[%s763] sm:$0x2] %vm721, %v768
        %770 = vst.msk [vmem:[%s763 - $0x1] sm:$0x8] %vm723, %v768
        %771 = vst.msk [vmem:[%s763 - $0x2] sm:$0x20] %vm725, %v768
        %v772 = vld [vmem:[#allocation3] sm:$0xf]
        %v773 = vld [vmem:[#allocation3 + $0x4] sm:$0xf]
        %v774 = vld [vmem:[#allocation3 + $0x8] sm:$0xf]
        %v775 = vld [vmem:[#allocation3 + $0xc] sm:$0xf]
        %v776 = vld [vmem:[%s3] sm:$0xff]
        %v777 = vld [vmem:[%s3 + $0x8] sm:$0xff]
        %v781 = vunpack.c.l.s4 1983009808
        %v782 = vunpack.c.0.s8 %v781
        %v783 = vlaneseq
        %v784 = vshrl.u32 %v783, 7
        %v785 = vsub.s32 %v782, %v784
        %v786 = vrot.slane %v772, %v785
        %v787 = vcombine.high %v786, %v786
        %v789 = vunpack.c.l.s4 1983009808
        %v790 = vunpack.c.0.s8 %v789
        %v791 = vlaneseq
        %v792 = vshrl.u32 %v791, 7
        %v793 = vsub.s32 %v790, %v792
        %v794 = vrot.slane %v773, %v793
        %v795 = vcombine.high %v794, %v794
        %vm796 = vcmask 1040384
        %vm797 = vcmask 1042434
        %vm798 = vmor %vm796, %vm797
        %vm799 = vcmask 1044484
        %vm800 = vmor %vm798, %vm799
        %vm801 = vcmask 1046534
        %vm802 = vmor %vm800, %vm801
        %v803 = vrot.slane %v786, 7
        %v804 = vrot.slane %v803, 2
        %v805 = vrot.slane %v787, 7
        %v806 = vsel %vm802, %v804, %v805
        %v807 = vrot.slane %v794, 7
        %v808 = vrot.slane %v807, 2
        %v809 = vrot.slane %v795, 7
        %v810 = vsel %vm802, %v808, %v809
        %s811 = scalar_lea.vmem %s3, 16
        %v812 = vld [vmem:[%s811] sm:$0xff]
        %v813 = vld [vmem:[%s811 + $0x8] sm:$0xff]
        %v814 = vcombine.low %v806, %v810
        %v816 = vunpack.c.l.s4 1983009808
        %v817 = vunpack.c.0.s8 %v816
        %v818 = vlaneseq
        %v819 = vshrl.u32 %v818, 7
        %v820 = vsub.s32 %v817, %v819
        %v821 = vrot.slane %v814, %v820
        %vm822 = vcmask 130048
        %v823 = vsel %vm822, %v821, 0
        %825 = vmatprep.subr.mxu0 0.0
        %826 = vmatpush1.msra.mxu0 0.0
        %827 = vmatprep.subr.mxu0 0.0
        %828 = vmatpush1.msra.mxu0 0.0
        %829 = vmatprep.subr.mxu0 0.0
        %830 = vmatpush1.msra.mxu0 0.0
        %831 = vmatprep.subr.mxu0 0.0
        %832 = vmatpush1.msra.mxu0 0.0
        %833 = vmatprep.subr.mxu0 0.0
        %834 = vmatpush1.msra.mxu0 0.0
        %835 = vmatprep.subr.mxu0 0.0
        %836 = vmatpush1.msra.mxu0 0.0
        %837 = vmatprep.subr.mxu0 0.0
        %838 = vmatpush1.msra.mxu0 0.0
        %839 = vmatprep.subr.mxu0 0.0
        %840 = vmatpush1.msra.mxu0 0.0
        %841 = vmatprep.subr.mxu0 0.0
        %842 = vmatpush1.msra.mxu0 0.0
        %843 = vmatprep.subr.mxu0 0.0
        %844 = vmatpush1.msra.mxu0 0.0
        %845 = vmatprep.subr.mxu0 0.0
        %846 = vmatpush1.msra.mxu0 0.0
        %847 = vmatprep.subr.mxu0 0.0
        %848 = vmatpush1.msra.mxu0 0.0
        %849 = vmatprep.subr.mxu0 0.0
        %850 = vmatpush1.msra.mxu0 0.0
        %851 = vmatprep.subr.mxu0 0.0
        %852 = vmatpush1.msra.mxu0 0.0
        %853 = vmatprep.subr.mxu0 0.0
        %854 = vmatpush1.msra.mxu0 %v813
        %855 = vmatprep.subr.mxu0 0.0
        %856 = vmatpush1.msra.mxu0 %v812
        %857 = vmatprep.subr.mxu0 0.0
        %858 = vmatpush2.msra.mxu0 0.0
        %859 = vmatprep.subr.mxu0 0.0
        %860 = vmatpush2.msra.mxu0 0.0
        %861 = vmatprep.subr.mxu0 0.0
        %862 = vmatpush2.msra.mxu0 0.0
        %863 = vmatprep.subr.mxu0 0.0
        %864 = vmatpush2.msra.mxu0 0.0
        %865 = vmatprep.subr.mxu0 0.0
        %866 = vmatpush2.msra.mxu0 0.0
        %867 = vmatprep.subr.mxu0 0.0
        %868 = vmatpush2.msra.mxu0 0.0
        %869 = vmatprep.subr.mxu0 0.0
        %870 = vmatpush2.msra.mxu0 0.0
        %871 = vmatprep.subr.mxu0 0.0
        %872 = vmatpush2.msra.mxu0 0.0
        %873 = vmatprep.subr.mxu0 0.0
        %874 = vmatpush2.msra.mxu0 0.0
        %875 = vmatprep.subr.mxu0 0.0
        %876 = vmatpush2.msra.mxu0 0.0
        %877 = vmatprep.subr.mxu0 0.0
        %878 = vmatpush2.msra.mxu0 0.0
        %879 = vmatprep.subr.mxu0 0.0
        %880 = vmatpush2.msra.mxu0 0.0
        %881 = vmatprep.subr.mxu0 0.0
        %882 = vmatpush2.msra.mxu0 0.0
        %883 = vmatprep.subr.mxu0 0.0
        %884 = vmatpush2.msra.mxu0 0.0
        %885 = vmatprep.subr.mxu0 0.0
        %886 = vmatpush2.msra.mxu0 0.0
        %887 = vmatprep.subr.mxu0 0.0
        %888 = vmatpush2.msra.mxu0 0.0
        %889 = vmatprep.mubr.f32.mxu0 0.0
        %890 = vmatmul.mubr.f32.gmra.mxu0 %v823
        %v891 = vpop.f32.mrf.mxu0
        %v892 = vadd.f32 0.0, %v891
        %v893 = vpop.f32.mrf.mxu0
        %894 = vdwg.mxu0
        %v895 = vcombine.low %v772, %v773
        %v897 = vunpack.c.l.s4 1983009808
        %v898 = vunpack.c.0.s8 %v897
        %v899 = vlaneseq
        %v900 = vshrl.u32 %v899, 7
        %v901 = vsub.s32 %v898, %v900
        %v902 = vrot.slane %v895, %v901
        %v903 = vsel %vm822, %v902, 0
        %905 = vmatprep.subr.mxu0 0.0
        %906 = vmatpush1.msra.mxu0 0.0
        %907 = vmatprep.subr.mxu0 0.0
        %908 = vmatpush1.msra.mxu0 0.0
        %909 = vmatprep.subr.mxu0 0.0
        %910 = vmatpush1.msra.mxu0 0.0
        %911 = vmatprep.subr.mxu0 0.0
        %912 = vmatpush1.msra.mxu0 0.0
        %913 = vmatprep.subr.mxu0 0.0
        %914 = vmatpush1.msra.mxu0 0.0
        %915 = vmatprep.subr.mxu0 0.0
        %916 = vmatpush1.msra.mxu0 0.0
        %917 = vmatprep.subr.mxu0 0.0
        %918 = vmatpush1.msra.mxu0 0.0
        %919 = vmatprep.subr.mxu0 0.0
        %920 = vmatpush1.msra.mxu0 0.0
        %921 = vmatprep.subr.mxu0 0.0
        %922 = vmatpush1.msra.mxu0 0.0
        %923 = vmatprep.subr.mxu0 0.0
        %924 = vmatpush1.msra.mxu0 0.0
        %925 = vmatprep.subr.mxu0 0.0
        %926 = vmatpush1.msra.mxu0 0.0
        %927 = vmatprep.subr.mxu0 0.0
        %928 = vmatpush1.msra.mxu0 0.0
        %929 = vmatprep.subr.mxu0 0.0
        %930 = vmatpush1.msra.mxu0 0.0
        %931 = vmatprep.subr.mxu0 0.0
        %932 = vmatpush1.msra.mxu0 0.0
        %933 = vmatprep.subr.mxu0 0.0
        %934 = vmatpush1.msra.mxu0 %v777
        %935 = vmatprep.subr.mxu0 0.0
        %936 = vmatpush1.msra.mxu0 %v776
        %937 = vmatprep.subr.mxu0 0.0
        %938 = vmatpush2.msra.mxu0 0.0
        %939 = vmatprep.subr.mxu0 0.0
        %940 = vmatpush2.msra.mxu0 0.0
        %941 = vmatprep.subr.mxu0 0.0
        %942 = vmatpush2.msra.mxu0 0.0
        %943 = vmatprep.subr.mxu0 0.0
        %944 = vmatpush2.msra.mxu0 0.0
        %945 = vmatprep.subr.mxu0 0.0
        %946 = vmatpush2.msra.mxu0 0.0
        %947 = vmatprep.subr.mxu0 0.0
        %948 = vmatpush2.msra.mxu0 0.0
        %949 = vmatprep.subr.mxu0 0.0
        %950 = vmatpush2.msra.mxu0 0.0
        %951 = vmatprep.subr.mxu0 0.0
        %952 = vmatpush2.msra.mxu0 0.0
        %953 = vmatprep.subr.mxu0 0.0
        %954 = vmatpush2.msra.mxu0 0.0
        %955 = vmatprep.subr.mxu0 0.0
        %956 = vmatpush2.msra.mxu0 0.0
        %957 = vmatprep.subr.mxu0 0.0
        %958 = vmatpush2.msra.mxu0 0.0
        %959 = vmatprep.subr.mxu0 0.0
        %960 = vmatpush2.msra.mxu0 0.0
        %961 = vmatprep.subr.mxu0 0.0
        %962 = vmatpush2.msra.mxu0 0.0
        %963 = vmatprep.subr.mxu0 0.0
        %964 = vmatpush2.msra.mxu0 0.0
        %965 = vmatprep.subr.mxu0 0.0
        %966 = vmatpush2.msra.mxu0 0.0
        %967 = vmatprep.subr.mxu0 0.0
        %968 = vmatpush2.msra.mxu0 0.0
        %969 = vmatprep.mubr.f32.mxu0 0.0
        %970 = vmatmul.mubr.f32.gmra.mxu0 %v903
        %v971 = vpop.f32.mrf.mxu0
        %v972 = vadd.f32 %v892, %v971
        %v973 = vpop.f32.mrf.mxu0
        %974 = vdwg.mxu0
        %s975 = scalar_lea.vmem %s3, 32
        %v976 = vld [vmem:[%s975] sm:$0xff]
        %v977 = vld [vmem:[%s975 + $0x8] sm:$0xff]
        %v978 = vcombine.low %v787, %v795
        %v980 = vunpack.c.l.s4 1983009808
        %v981 = vunpack.c.0.s8 %v980
        %v982 = vlaneseq
        %v983 = vshrl.u32 %v982, 7
        %v984 = vsub.s32 %v981, %v983
        %v985 = vrot.slane %v978, %v984
        %v986 = vsel %vm822, %v985, 0
        %988 = vmatprep.subr.mxu0 0.0
        %989 = vmatpush1.msra.mxu0 0.0
        %990 = vmatprep.subr.mxu0 0.0
        %991 = vmatpush1.msra.mxu0 0.0
        %992 = vmatprep.subr.mxu0 0.0
        %993 = vmatpush1.msra.mxu0 0.0
        %994 = vmatprep.subr.mxu0 0.0
        %995 = vmatpush1.msra.mxu0 0.0
        %996 = vmatprep.subr.mxu0 0.0
        %997 = vmatpush1.msra.mxu0 0.0
        %998 = vmatprep.subr.mxu0 0.0
        %999 = vmatpush1.msra.mxu0 0.0
        %1000 = vmatprep.subr.mxu0 0.0
        %1001 = vmatpush1.msra.mxu0 0.0
        %1002 = vmatprep.subr.mxu0 0.0
        %1003 = vmatpush1.msra.mxu0 0.0
        %1004 = vmatprep.subr.mxu0 0.0
        %1005 = vmatpush1.msra.mxu0 0.0
        %1006 = vmatprep.subr.mxu0 0.0
        %1007 = vmatpush1.msra.mxu0 0.0
        %1008 = vmatprep.subr.mxu0 0.0
        %1009 = vmatpush1.msra.mxu0 0.0
        %1010 = vmatprep.subr.mxu0 0.0
        %1011 = vmatpush1.msra.mxu0 0.0
        %1012 = vmatprep.subr.mxu0 0.0
        %1013 = vmatpush1.msra.mxu0 0.0
        %1014 = vmatprep.subr.mxu0 0.0
        %1015 = vmatpush1.msra.mxu0 0.0
        %1016 = vmatprep.subr.mxu0 0.0
        %1017 = vmatpush1.msra.mxu0 %v977
        %1018 = vmatprep.subr.mxu0 0.0
        %1019 = vmatpush1.msra.mxu0 %v976
        %1020 = vmatprep.subr.mxu0 0.0
        %1021 = vmatpush2.msra.mxu0 0.0
        %1022 = vmatprep.subr.mxu0 0.0
        %1023 = vmatpush2.msra.mxu0 0.0
        %1024 = vmatprep.subr.mxu0 0.0
        %1025 = vmatpush2.msra.mxu0 0.0
        %1026 = vmatprep.subr.mxu0 0.0
        %1027 = vmatpush2.msra.mxu0 0.0
        %1028 = vmatprep.subr.mxu0 0.0
        %1029 = vmatpush2.msra.mxu0 0.0
        %1030 = vmatprep.subr.mxu0 0.0
        %1031 = vmatpush2.msra.mxu0 0.0
        %1032 = vmatprep.subr.mxu0 0.0
        %1033 = vmatpush2.msra.mxu0 0.0
        %1034 = vmatprep.subr.mxu0 0.0
        %1035 = vmatpush2.msra.mxu0 0.0
        %1036 = vmatprep.subr.mxu0 0.0
        %1037 = vmatpush2.msra.mxu0 0.0
        %1038 = vmatprep.subr.mxu0 0.0
        %1039 = vmatpush2.msra.mxu0 0.0
        %1040 = vmatprep.subr.mxu0 0.0
        %1041 = vmatpush2.msra.mxu0 0.0
        %1042 = vmatprep.subr.mxu0 0.0
        %1043 = vmatpush2.msra.mxu0 0.0
        %1044 = vmatprep.subr.mxu0 0.0
        %1045 = vmatpush2.msra.mxu0 0.0
        %1046 = vmatprep.subr.mxu0 0.0
        %1047 = vmatpush2.msra.mxu0 0.0
        %1048 = vmatprep.subr.mxu0 0.0
        %1049 = vmatpush2.msra.mxu0 0.0
        %1050 = vmatprep.subr.mxu0 0.0
        %1051 = vmatpush2.msra.mxu0 0.0
        %1052 = vmatprep.mubr.f32.mxu0 0.0
        %1053 = vmatmul.mubr.f32.gmra.mxu0 %v986
        %v1054 = vpop.f32.mrf.mxu0
        %v1055 = vadd.f32 0.0, %v1054
        %v1056 = vpop.f32.mrf.mxu0
        %1057 = vdwg.mxu0
        %v1058 = vadd.f32 %v972, %v1055
        %s1059 = scalar_lea.vmem %s3, 48
        %v1060 = vld [vmem:[%s1059] sm:$0xff]
        %v1061 = vld [vmem:[%s1059 + $0x8] sm:$0xff]
        %v1063 = vcombine.low %v773, %v774
        %v1065 = vunpack.c.l.s4 1983009808
        %v1066 = vunpack.c.0.s8 %v1065
        %v1067 = vlaneseq
        %v1068 = vshrl.u32 %v1067, 7
        %v1069 = vsub.s32 %v1066, %v1068
        %v1070 = vrot.slane %v1063, %v1069
        %v1071 = vsel %vm822, %v1070, 0
        %1073 = vmatprep.subr.mxu0 0.0
        %1074 = vmatpush1.msra.mxu0 0.0
        %1075 = vmatprep.subr.mxu0 0.0
        %1076 = vmatpush1.msra.mxu0 0.0
        %1077 = vmatprep.subr.mxu0 0.0
        %1078 = vmatpush1.msra.mxu0 0.0
        %1079 = vmatprep.subr.mxu0 0.0
        %1080 = vmatpush1.msra.mxu0 0.0
        %1081 = vmatprep.subr.mxu0 0.0
        %1082 = vmatpush1.msra.mxu0 0.0
        %1083 = vmatprep.subr.mxu0 0.0
        %1084 = vmatpush1.msra.mxu0 0.0
        %1085 = vmatprep.subr.mxu0 0.0
        %1086 = vmatpush1.msra.mxu0 0.0
        %1087 = vmatprep.subr.mxu0 0.0
        %1088 = vmatpush1.msra.mxu0 0.0
        %1089 = vmatprep.subr.mxu0 0.0
        %1090 = vmatpush1.msra.mxu0 0.0
        %1091 = vmatprep.subr.mxu0 0.0
        %1092 = vmatpush1.msra.mxu0 0.0
        %1093 = vmatprep.subr.mxu0 0.0
        %1094 = vmatpush1.msra.mxu0 0.0
        %1095 = vmatprep.subr.mxu0 0.0
        %1096 = vmatpush1.msra.mxu0 0.0
        %1097 = vmatprep.subr.mxu0 0.0
        %1098 = vmatpush1.msra.mxu0 0.0
        %1099 = vmatprep.subr.mxu0 0.0
        %1100 = vmatpush1.msra.mxu0 0.0
        %1101 = vmatprep.subr.mxu0 0.0
        %1102 = vmatpush1.msra.mxu0 %v1061
        %1103 = vmatprep.subr.mxu0 0.0
        %1104 = vmatpush1.msra.mxu0 %v1060
        %1105 = vmatprep.subr.mxu0 0.0
        %1106 = vmatpush2.msra.mxu0 0.0
        %1107 = vmatprep.subr.mxu0 0.0
        %1108 = vmatpush2.msra.mxu0 0.0
        %1109 = vmatprep.subr.mxu0 0.0
        %1110 = vmatpush2.msra.mxu0 0.0
        %1111 = vmatprep.subr.mxu0 0.0
        %1112 = vmatpush2.msra.mxu0 0.0
        %1113 = vmatprep.subr.mxu0 0.0
        %1114 = vmatpush2.msra.mxu0 0.0
        %1115 = vmatprep.subr.mxu0 0.0
        %1116 = vmatpush2.msra.mxu0 0.0
        %1117 = vmatprep.subr.mxu0 0.0
        %1118 = vmatpush2.msra.mxu0 0.0
        %1119 = vmatprep.subr.mxu0 0.0
        %1120 = vmatpush2.msra.mxu0 0.0
        %1121 = vmatprep.subr.mxu0 0.0
        %1122 = vmatpush2.msra.mxu0 0.0
        %1123 = vmatprep.subr.mxu0 0.0
        %1124 = vmatpush2.msra.mxu0 0.0
        %1125 = vmatprep.subr.mxu0 0.0
        %1126 = vmatpush2.msra.mxu0 0.0
        %1127 = vmatprep.subr.mxu0 0.0
        %1128 = vmatpush2.msra.mxu0 0.0
        %1129 = vmatprep.subr.mxu0 0.0
        %1130 = vmatpush2.msra.mxu0 0.0
        %1131 = vmatprep.subr.mxu0 0.0
        %1132 = vmatpush2.msra.mxu0 0.0
        %1133 = vmatprep.subr.mxu0 0.0
        %1134 = vmatpush2.msra.mxu0 0.0
        %1135 = vmatprep.subr.mxu0 0.0
        %1136 = vmatpush2.msra.mxu0 0.0
        %1137 = vmatprep.mubr.f32.mxu0 0.0
        %1138 = vmatmul.mubr.f32.gmra.mxu0 %v1071
        %v1139 = vpop.f32.mrf.mxu0
        %v1140 = vadd.f32 0.0, %v1139
        %v1141 = vpop.f32.mrf.mxu0
        %1142 = vdwg.mxu0
        %v1143 = vadd.f32 %v1058, %v1140
        %v1145 = vunpack.c.l.s4 1983009808
        %v1146 = vunpack.c.0.s8 %v1145
        %v1147 = vlaneseq
        %v1148 = vshrl.u32 %v1147, 7
        %v1149 = vsub.s32 %v1146, %v1148
        %v1150 = vrot.slane %v774, %v1149
        %v1151 = vcombine.high %v1150, %v1150
        %v1152 = vrot.slane %v1150, 7
        %v1153 = vrot.slane %v1152, 2
        %v1154 = vrot.slane %v1151, 7
        %v1155 = vsel %vm802, %v1153, %v1154
        %s1156 = scalar_lea.vmem %s3, 64
        %v1157 = vld [vmem:[%s1156] sm:$0xff]
        %v1158 = vld [vmem:[%s1156 + $0x8] sm:$0xff]
        %v1159 = vcombine.low %v810, %v1155
        %v1161 = vunpack.c.l.s4 1983009808
        %v1162 = vunpack.c.0.s8 %v1161
        %v1163 = vlaneseq
        %v1164 = vshrl.u32 %v1163, 7
        %v1165 = vsub.s32 %v1162, %v1164
        %v1166 = vrot.slane %v1159, %v1165
        %v1167 = vsel %vm822, %v1166, 0
        %1169 = vmatprep.subr.mxu0 0.0
        %1170 = vmatpush1.msra.mxu0 0.0
        %1171 = vmatprep.subr.mxu0 0.0
        %1172 = vmatpush1.msra.mxu0 0.0
        %1173 = vmatprep.subr.mxu0 0.0
        %1174 = vmatpush1.msra.mxu0 0.0
        %1175 = vmatprep.subr.mxu0 0.0
        %1176 = vmatpush1.msra.mxu0 0.0
        %1177 = vmatprep.subr.mxu0 0.0
        %1178 = vmatpush1.msra.mxu0 0.0
        %1179 = vmatprep.subr.mxu0 0.0
        %1180 = vmatpush1.msra.mxu0 0.0
        %1181 = vmatprep.subr.mxu0 0.0
        %1182 = vmatpush1.msra.mxu0 0.0
        %1183 = vmatprep.subr.mxu0 0.0
        %1184 = vmatpush1.msra.mxu0 0.0
        %1185 = vmatprep.subr.mxu0 0.0
        %1186 = vmatpush1.msra.mxu0 0.0
        %1187 = vmatprep.subr.mxu0 0.0
        %1188 = vmatpush1.msra.mxu0 0.0
        %1189 = vmatprep.subr.mxu0 0.0
        %1190 = vmatpush1.msra.mxu0 0.0
        %1191 = vmatprep.subr.mxu0 0.0
        %1192 = vmatpush1.msra.mxu0 0.0
        %1193 = vmatprep.subr.mxu0 0.0
        %1194 = vmatpush1.msra.mxu0 0.0
        %1195 = vmatprep.subr.mxu0 0.0
        %1196 = vmatpush1.msra.mxu0 0.0
        %1197 = vmatprep.subr.mxu0 0.0
        %1198 = vmatpush1.msra.mxu0 %v1158
        %1199 = vmatprep.subr.mxu0 0.0
        %1200 = vmatpush1.msra.mxu0 %v1157
        %1201 = vmatprep.subr.mxu0 0.0
        %1202 = vmatpush2.msra.mxu0 0.0
        %1203 = vmatprep.subr.mxu0 0.0
        %1204 = vmatpush2.msra.mxu0 0.0
        %1205 = vmatprep.subr.mxu0 0.0
        %1206 = vmatpush2.msra.mxu0 0.0
        %1207 = vmatprep.subr.mxu0 0.0
        %1208 = vmatpush2.msra.mxu0 0.0
        %1209 = vmatprep.subr.mxu0 0.0
        %1210 = vmatpush2.msra.mxu0 0.0
        %1211 = vmatprep.subr.mxu0 0.0
        %1212 = vmatpush2.msra.mxu0 0.0
        %1213 = vmatprep.subr.mxu0 0.0
        %1214 = vmatpush2.msra.mxu0 0.0
        %1215 = vmatprep.subr.mxu0 0.0
        %1216 = vmatpush2.msra.mxu0 0.0
        %1217 = vmatprep.subr.mxu0 0.0
        %1218 = vmatpush2.msra.mxu0 0.0
        %1219 = vmatprep.subr.mxu0 0.0
        %1220 = vmatpush2.msra.mxu0 0.0
        %1221 = vmatprep.subr.mxu0 0.0
        %1222 = vmatpush2.msra.mxu0 0.0
        %1223 = vmatprep.subr.mxu0 0.0
        %1224 = vmatpush2.msra.mxu0 0.0
        %1225 = vmatprep.subr.mxu0 0.0
        %1226 = vmatpush2.msra.mxu0 0.0
        %1227 = vmatprep.subr.mxu0 0.0
        %1228 = vmatpush2.msra.mxu0 0.0
        %1229 = vmatprep.subr.mxu0 0.0
        %1230 = vmatpush2.msra.mxu0 0.0
        %1231 = vmatprep.subr.mxu0 0.0
        %1232 = vmatpush2.msra.mxu0 0.0
        %1233 = vmatprep.mubr.f32.mxu0 0.0
        %1234 = vmatmul.mubr.f32.gmra.mxu0 %v1167
        %v1235 = vpop.f32.mrf.mxu0
        %v1236 = vadd.f32 0.0, %v1235
        %v1237 = vpop.f32.mrf.mxu0
        %1238 = vdwg.mxu0
        %v1239 = vadd.f32 %v1143, %v1236
        %s1240 = scalar_lea.vmem %s3, 80
        %v1241 = vld [vmem:[%s1240] sm:$0xff]
        %v1242 = vld [vmem:[%s1240 + $0x8] sm:$0xff]
        %v1243 = vcombine.low %v795, %v1151
        %v1245 = vunpack.c.l.s4 1983009808
        %v1246 = vunpack.c.0.s8 %v1245
        %v1247 = vlaneseq
        %v1248 = vshrl.u32 %v1247, 7
        %v1249 = vsub.s32 %v1246, %v1248
        %v1250 = vrot.slane %v1243, %v1249
        %v1251 = vsel %vm822, %v1250, 0
        %1253 = vmatprep.subr.mxu0 0.0
        %1254 = vmatpush1.msra.mxu0 0.0
        %1255 = vmatprep.subr.mxu0 0.0
        %1256 = vmatpush1.msra.mxu0 0.0
        %1257 = vmatprep.subr.mxu0 0.0
        %1258 = vmatpush1.msra.mxu0 0.0
        %1259 = vmatprep.subr.mxu0 0.0
        %1260 = vmatpush1.msra.mxu0 0.0
        %1261 = vmatprep.subr.mxu0 0.0
        %1262 = vmatpush1.msra.mxu0 0.0
        %1263 = vmatprep.subr.mxu0 0.0
        %1264 = vmatpush1.msra.mxu0 0.0
        %1265 = vmatprep.subr.mxu0 0.0
        %1266 = vmatpush1.msra.mxu0 0.0
        %1267 = vmatprep.subr.mxu0 0.0
        %1268 = vmatpush1.msra.mxu0 0.0
        %1269 = vmatprep.subr.mxu0 0.0
        %1270 = vmatpush1.msra.mxu0 0.0
        %1271 = vmatprep.subr.mxu0 0.0
        %1272 = vmatpush1.msra.mxu0 0.0
        %1273 = vmatprep.subr.mxu0 0.0
        %1274 = vmatpush1.msra.mxu0 0.0
        %1275 = vmatprep.subr.mxu0 0.0
        %1276 = vmatpush1.msra.mxu0 0.0
        %1277 = vmatprep.subr.mxu0 0.0
        %1278 = vmatpush1.msra.mxu0 0.0
        %1279 = vmatprep.subr.mxu0 0.0
        %1280 = vmatpush1.msra.mxu0 0.0
        %1281 = vmatprep.subr.mxu0 0.0
        %1282 = vmatpush1.msra.mxu0 %v1242
        %1283 = vmatprep.subr.mxu0 0.0
        %1284 = vmatpush1.msra.mxu0 %v1241
        %1285 = vmatprep.subr.mxu0 0.0
        %1286 = vmatpush2.msra.mxu0 0.0
        %1287 = vmatprep.subr.mxu0 0.0
        %1288 = vmatpush2.msra.mxu0 0.0
        %1289 = vmatprep.subr.mxu0 0.0
        %1290 = vmatpush2.msra.mxu0 0.0
        %1291 = vmatprep.subr.mxu0 0.0
        %1292 = vmatpush2.msra.mxu0 0.0
        %1293 = vmatprep.subr.mxu0 0.0
        %1294 = vmatpush2.msra.mxu0 0.0
        %1295 = vmatprep.subr.mxu0 0.0
        %1296 = vmatpush2.msra.mxu0 0.0
        %1297 = vmatprep.subr.mxu0 0.0
        %1298 = vmatpush2.msra.mxu0 0.0
        %1299 = vmatprep.subr.mxu0 0.0
        %1300 = vmatpush2.msra.mxu0 0.0
        %1301 = vmatprep.subr.mxu0 0.0
        %1302 = vmatpush2.msra.mxu0 0.0
        %1303 = vmatprep.subr.mxu0 0.0
        %1304 = vmatpush2.msra.mxu0 0.0
        %1305 = vmatprep.subr.mxu0 0.0
        %1306 = vmatpush2.msra.mxu0 0.0
        %1307 = vmatprep.subr.mxu0 0.0
        %1308 = vmatpush2.msra.mxu0 0.0
        %1309 = vmatprep.subr.mxu0 0.0
        %1310 = vmatpush2.msra.mxu0 0.0
        %1311 = vmatprep.subr.mxu0 0.0
        %1312 = vmatpush2.msra.mxu0 0.0
        %1313 = vmatprep.subr.mxu0 0.0
        %1314 = vmatpush2.msra.mxu0 0.0
        %1315 = vmatprep.subr.mxu0 0.0
        %1316 = vmatpush2.msra.mxu0 0.0
        %1317 = vmatprep.mubr.f32.mxu0 0.0
        %1318 = vmatmul.mubr.f32.gmra.mxu0 %v1251
        %v1319 = vpop.f32.mrf.mxu0
        %v1320 = vadd.f32 0.0, %v1319
        %v1321 = vpop.f32.mrf.mxu0
        %1322 = vdwg.mxu0
        %v1323 = vadd.f32 %v1239, %v1320
        %s1324 = scalar_lea.vmem %s3, 96
        %v1325 = vld [vmem:[%s1324] sm:$0xff]
        %v1326 = vld [vmem:[%s1324 + $0x8] sm:$0xff]
        %v1328 = vcombine.low %v774, %v775
        %v1330 = vunpack.c.l.s4 1983009808
        %v1331 = vunpack.c.0.s8 %v1330
        %v1332 = vlaneseq
        %v1333 = vshrl.u32 %v1332, 7
        %v1334 = vsub.s32 %v1331, %v1333
        %v1335 = vrot.slane %v1328, %v1334
        %v1336 = vsel %vm822, %v1335, 0
        %1338 = vmatprep.subr.mxu0 0.0
        %1339 = vmatpush1.msra.mxu0 0.0
        %1340 = vmatprep.subr.mxu0 0.0
        %1341 = vmatpush1.msra.mxu0 0.0
        %1342 = vmatprep.subr.mxu0 0.0
        %1343 = vmatpush1.msra.mxu0 0.0
        %1344 = vmatprep.subr.mxu0 0.0
        %1345 = vmatpush1.msra.mxu0 0.0
        %1346 = vmatprep.subr.mxu0 0.0
        %1347 = vmatpush1.msra.mxu0 0.0
        %1348 = vmatprep.subr.mxu0 0.0
        %1349 = vmatpush1.msra.mxu0 0.0
        %1350 = vmatprep.subr.mxu0 0.0
        %1351 = vmatpush1.msra.mxu0 0.0
        %1352 = vmatprep.subr.mxu0 0.0
        %1353 = vmatpush1.msra.mxu0 0.0
        %1354 = vmatprep.subr.mxu0 0.0
        %1355 = vmatpush1.msra.mxu0 0.0
        %1356 = vmatprep.subr.mxu0 0.0
        %1357 = vmatpush1.msra.mxu0 0.0
        %1358 = vmatprep.subr.mxu0 0.0
        %1359 = vmatpush1.msra.mxu0 0.0
        %1360 = vmatprep.subr.mxu0 0.0
        %1361 = vmatpush1.msra.mxu0 0.0
        %1362 = vmatprep.subr.mxu0 0.0
        %1363 = vmatpush1.msra.mxu0 0.0
        %1364 = vmatprep.subr.mxu0 0.0
        %1365 = vmatpush1.msra.mxu0 0.0
        %1366 = vmatprep.subr.mxu0 0.0
        %1367 = vmatpush1.msra.mxu0 %v1326
        %1368 = vmatprep.subr.mxu0 0.0
        %1369 = vmatpush1.msra.mxu0 %v1325
        %1370 = vmatprep.subr.mxu0 0.0
        %1371 = vmatpush2.msra.mxu0 0.0
        %1372 = vmatprep.subr.mxu0 0.0
        %1373 = vmatpush2.msra.mxu0 0.0
        %1374 = vmatprep.subr.mxu0 0.0
        %1375 = vmatpush2.msra.mxu0 0.0
        %1376 = vmatprep.subr.mxu0 0.0
        %1377 = vmatpush2.msra.mxu0 0.0
        %1378 = vmatprep.subr.mxu0 0.0
        %1379 = vmatpush2.msra.mxu0 0.0
        %1380 = vmatprep.subr.mxu0 0.0
        %1381 = vmatpush2.msra.mxu0 0.0
        %1382 = vmatprep.subr.mxu0 0.0
        %1383 = vmatpush2.msra.mxu0 0.0
        %1384 = vmatprep.subr.mxu0 0.0
        %1385 = vmatpush2.msra.mxu0 0.0
        %1386 = vmatprep.subr.mxu0 0.0
        %1387 = vmatpush2.msra.mxu0 0.0
        %1388 = vmatprep.subr.mxu0 0.0
        %1389 = vmatpush2.msra.mxu0 0.0
        %1390 = vmatprep.subr.mxu0 0.0
        %1391 = vmatpush2.msra.mxu0 0.0
        %1392 = vmatprep.subr.mxu0 0.0
        %1393 = vmatpush2.msra.mxu0 0.0
        %1394 = vmatprep.subr.mxu0 0.0
        %1395 = vmatpush2.msra.mxu0 0.0
        %1396 = vmatprep.subr.mxu0 0.0
        %1397 = vmatpush2.msra.mxu0 0.0
        %1398 = vmatprep.subr.mxu0 0.0
        %1399 = vmatpush2.msra.mxu0 0.0
        %1400 = vmatprep.subr.mxu0 0.0
        %1401 = vmatpush2.msra.mxu0 0.0
        %1402 = vmatprep.mubr.f32.mxu0 0.0
        %1403 = vmatmul.mubr.f32.gmra.mxu0 %v1336
        %v1404 = vpop.f32.mrf.mxu0
        %v1405 = vadd.f32 0.0, %v1404
        %v1406 = vpop.f32.mrf.mxu0
        %1407 = vdwg.mxu0
        %v1408 = vadd.f32 %v1323, %v1405
        %v1410 = vunpack.c.l.s4 1983009808
        %v1411 = vunpack.c.0.s8 %v1410
        %v1412 = vlaneseq
        %v1413 = vshrl.u32 %v1412, 7
        %v1414 = vsub.s32 %v1411, %v1413
        %v1415 = vrot.slane %v775, %v1414
        %v1416 = vcombine.high %v1415, %v1415
        %v1417 = vrot.slane %v1415, 7
        %v1418 = vrot.slane %v1417, 2
        %v1419 = vrot.slane %v1416, 7
        %v1420 = vsel %vm802, %v1418, %v1419
        %s1421 = scalar_lea.vmem %s3, 112
        %v1422 = vld [vmem:[%s1421] sm:$0xff]
        %v1423 = vld [vmem:[%s1421 + $0x8] sm:$0xff]
        %v1424 = vcombine.low %v1155, %v1420
        %v1426 = vunpack.c.l.s4 1983009808
        %v1427 = vunpack.c.0.s8 %v1426
        %v1428 = vlaneseq
        %v1429 = vshrl.u32 %v1428, 7
        %v1430 = vsub.s32 %v1427, %v1429
        %v1431 = vrot.slane %v1424, %v1430
        %v1432 = vsel %vm822, %v1431, 0
        %1434 = vmatprep.subr.mxu0 0.0
        %1435 = vmatpush1.msra.mxu0 0.0
        %1436 = vmatprep.subr.mxu0 0.0
        %1437 = vmatpush1.msra.mxu0 0.0
        %1438 = vmatprep.subr.mxu0 0.0
        %1439 = vmatpush1.msra.mxu0 0.0
        %1440 = vmatprep.subr.mxu0 0.0
        %1441 = vmatpush1.msra.mxu0 0.0
        %1442 = vmatprep.subr.mxu0 0.0
        %1443 = vmatpush1.msra.mxu0 0.0
        %1444 = vmatprep.subr.mxu0 0.0
        %1445 = vmatpush1.msra.mxu0 0.0
        %1446 = vmatprep.subr.mxu0 0.0
        %1447 = vmatpush1.msra.mxu0 0.0
        %1448 = vmatprep.subr.mxu0 0.0
        %1449 = vmatpush1.msra.mxu0 0.0
        %1450 = vmatprep.subr.mxu0 0.0
        %1451 = vmatpush1.msra.mxu0 0.0
        %1452 = vmatprep.subr.mxu0 0.0
        %1453 = vmatpush1.msra.mxu0 0.0
        %1454 = vmatprep.subr.mxu0 0.0
        %1455 = vmatpush1.msra.mxu0 0.0
        %1456 = vmatprep.subr.mxu0 0.0
        %1457 = vmatpush1.msra.mxu0 0.0
        %1458 = vmatprep.subr.mxu0 0.0
        %1459 = vmatpush1.msra.mxu0 0.0
        %1460 = vmatprep.subr.mxu0 0.0
        %1461 = vmatpush1.msra.mxu0 0.0
        %1462 = vmatprep.subr.mxu0 0.0
        %1463 = vmatpush1.msra.mxu0 %v1423
        %1464 = vmatprep.subr.mxu0 0.0
        %1465 = vmatpush1.msra.mxu0 %v1422
        %1466 = vmatprep.subr.mxu0 0.0
        %1467 = vmatpush2.msra.mxu0 0.0
        %1468 = vmatprep.subr.mxu0 0.0
        %1469 = vmatpush2.msra.mxu0 0.0
        %1470 = vmatprep.subr.mxu0 0.0
        %1471 = vmatpush2.msra.mxu0 0.0
        %1472 = vmatprep.subr.mxu0 0.0
        %1473 = vmatpush2.msra.mxu0 0.0
        %1474 = vmatprep.subr.mxu0 0.0
        %1475 = vmatpush2.msra.mxu0 0.0
        %1476 = vmatprep.subr.mxu0 0.0
        %1477 = vmatpush2.msra.mxu0 0.0
        %1478 = vmatprep.subr.mxu0 0.0
        %1479 = vmatpush2.msra.mxu0 0.0
        %1480 = vmatprep.subr.mxu0 0.0
        %1481 = vmatpush2.msra.mxu0 0.0
        %1482 = vmatprep.subr.mxu0 0.0
        %1483 = vmatpush2.msra.mxu0 0.0
        %1484 = vmatprep.subr.mxu0 0.0
        %1485 = vmatpush2.msra.mxu0 0.0
        %1486 = vmatprep.subr.mxu0 0.0
        %1487 = vmatpush2.msra.mxu0 0.0
        %1488 = vmatprep.subr.mxu0 0.0
        %1489 = vmatpush2.msra.mxu0 0.0
        %1490 = vmatprep.subr.mxu0 0.0
        %1491 = vmatpush2.msra.mxu0 0.0
        %1492 = vmatprep.subr.mxu0 0.0
        %1493 = vmatpush2.msra.mxu0 0.0
        %1494 = vmatprep.subr.mxu0 0.0
        %1495 = vmatpush2.msra.mxu0 0.0
        %1496 = vmatprep.subr.mxu0 0.0
        %1497 = vmatpush2.msra.mxu0 0.0
        %1498 = vmatprep.mubr.f32.mxu0 0.0
        %1499 = vmatmul.mubr.f32.gmra.mxu0 %v1432
        %v1500 = vpop.f32.mrf.mxu0
        %v1501 = vadd.f32 0.0, %v1500
        %v1502 = vpop.f32.mrf.mxu0
        %1503 = vdwg.mxu0
        %v1504 = vadd.f32 %v1408, %v1501
        %s1505 = scalar_lea.vmem %s3, 128
        %v1506 = vld [vmem:[%s1505] sm:$0xff]
        %v1507 = vld [vmem:[%s1505 + $0x8] sm:$0xff]
        %v1508 = vcombine.low %v1151, %v1416
        %v1510 = vunpack.c.l.s4 1983009808
        %v1511 = vunpack.c.0.s8 %v1510
        %v1512 = vlaneseq
        %v1513 = vshrl.u32 %v1512, 7
        %v1514 = vsub.s32 %v1511, %v1513
        %v1515 = vrot.slane %v1508, %v1514
        %v1516 = vsel %vm822, %v1515, 0
        %1518 = vmatprep.subr.mxu0 0.0
        %1519 = vmatpush1.msra.mxu0 0.0
        %1520 = vmatprep.subr.mxu0 0.0
        %1521 = vmatpush1.msra.mxu0 0.0
        %1522 = vmatprep.subr.mxu0 0.0
        %1523 = vmatpush1.msra.mxu0 0.0
        %1524 = vmatprep.subr.mxu0 0.0
        %1525 = vmatpush1.msra.mxu0 0.0
        %1526 = vmatprep.subr.mxu0 0.0
        %1527 = vmatpush1.msra.mxu0 0.0
        %1528 = vmatprep.subr.mxu0 0.0
        %1529 = vmatpush1.msra.mxu0 0.0
        %1530 = vmatprep.subr.mxu0 0.0
        %1531 = vmatpush1.msra.mxu0 0.0
        %1532 = vmatprep.subr.mxu0 0.0
        %1533 = vmatpush1.msra.mxu0 0.0
        %1534 = vmatprep.subr.mxu0 0.0
        %1535 = vmatpush1.msra.mxu0 0.0
        %1536 = vmatprep.subr.mxu0 0.0
        %1537 = vmatpush1.msra.mxu0 0.0
        %1538 = vmatprep.subr.mxu0 0.0
        %1539 = vmatpush1.msra.mxu0 0.0
        %1540 = vmatprep.subr.mxu0 0.0
        %1541 = vmatpush1.msra.mxu0 0.0
        %1542 = vmatprep.subr.mxu0 0.0
        %1543 = vmatpush1.msra.mxu0 0.0
        %1544 = vmatprep.subr.mxu0 0.0
        %1545 = vmatpush1.msra.mxu0 0.0
        %1546 = vmatprep.subr.mxu0 0.0
        %1547 = vmatpush1.msra.mxu0 %v1507
        %1548 = vmatprep.subr.mxu0 0.0
        %1549 = vmatpush1.msra.mxu0 %v1506
        %1550 = vmatprep.subr.mxu0 0.0
        %1551 = vmatpush2.msra.mxu0 0.0
        %1552 = vmatprep.subr.mxu0 0.0
        %1553 = vmatpush2.msra.mxu0 0.0
        %1554 = vmatprep.subr.mxu0 0.0
        %1555 = vmatpush2.msra.mxu0 0.0
        %1556 = vmatprep.subr.mxu0 0.0
        %1557 = vmatpush2.msra.mxu0 0.0
        %1558 = vmatprep.subr.mxu0 0.0
        %1559 = vmatpush2.msra.mxu0 0.0
        %1560 = vmatprep.subr.mxu0 0.0
        %1561 = vmatpush2.msra.mxu0 0.0
        %1562 = vmatprep.subr.mxu0 0.0
        %1563 = vmatpush2.msra.mxu0 0.0
        %1564 = vmatprep.subr.mxu0 0.0
        %1565 = vmatpush2.msra.mxu0 0.0
        %1566 = vmatprep.subr.mxu0 0.0
        %1567 = vmatpush2.msra.mxu0 0.0
        %1568 = vmatprep.subr.mxu0 0.0
        %1569 = vmatpush2.msra.mxu0 0.0
        %1570 = vmatprep.subr.mxu0 0.0
        %1571 = vmatpush2.msra.mxu0 0.0
        %1572 = vmatprep.subr.mxu0 0.0
        %1573 = vmatpush2.msra.mxu0 0.0
        %1574 = vmatprep.subr.mxu0 0.0
        %1575 = vmatpush2.msra.mxu0 0.0
        %1576 = vmatprep.subr.mxu0 0.0
        %1577 = vmatpush2.msra.mxu0 0.0
        %1578 = vmatprep.subr.mxu0 0.0
        %1579 = vmatpush2.msra.mxu0 0.0
        %1580 = vmatprep.subr.mxu0 0.0
        %1581 = vmatpush2.msra.mxu0 0.0
        %1582 = vmatprep.mubr.f32.mxu0 0.0
        %1583 = vmatmul.mubr.f32.gmra.mxu0 %v1516
        %v1584 = vpop.f32.mrf.mxu0
        %v1585 = vadd.f32 0.0, %v1584
        %v1586 = vpop.f32.mrf.mxu0
        %1587 = vdwg.mxu0
        %v1588 = vadd.f32 %v1504, %v1585
        %v1589 = vld [vmem:[%s4] sm:$0x1]
        %v1591 = vlaneseq
        %v1592 = vshrl.u32 %v1591, 7
        %v1593 = vsub.s32 0, %v1592
        %v1594 = vrot.slane %v1589, %v1593
        %v1596 = vadd.f32 %v1588, %v1594
        %v1597 = vmax.f32 %v1596, 0.0
        %vm1598 = vcmask 519168
        %v1599 = vsel %vm1598, %v1597, -inf
        %v1600 = vrot.slane %v1599, 4
        %v1601 = vmax.f32 %v1599, %v1600
        %v1602 = vrot.slane %v1601, 2
        %v1603 = vmax.f32 %v1601, %v1602
        %v1604 = vrot.slane %v1603, 1
        %v1605 = vmax.f32 %v1603, %v1604
        %v1606 = vld [vmem:[%s5] sm:$0xff]
        %v1607 = vld [vmem:[%s5 + $0x8] sm:$0xff]
        %v1608 = vld [vmem:[%s5 + $0x10] sm:$0xff]
        %v1609 = vld [vmem:[%s5 + $0x18] sm:$0xff]
        %v1610 = vld [vmem:[%s5 + $0x20] sm:$0xff]
        %v1611 = vld [vmem:[%s5 + $0x28] sm:$0xff]
        %v1612 = vld [vmem:[%s5 + $0x30] sm:$0xff]
        %v1613 = vld [vmem:[%s5 + $0x38] sm:$0xff]
        %v1614 = vld [vmem:[%s6] sm:$0x1]
        %vm1615 = vcmask 523264
        %v1617 = vsel %vm1615, %v1605, 0
        %1619 = vmatprep.subr.mxu0 0.0
        %1620 = vmatpush1.msra.mxu0 0.0
        %1621 = vmatprep.subr.mxu0 0.0
        %1622 = vmatpush1.msra.mxu0 0.0
        %1623 = vmatprep.subr.mxu0 0.0
        %1624 = vmatpush1.msra.mxu0 0.0
        %1625 = vmatprep.subr.mxu0 0.0
        %1626 = vmatpush1.msra.mxu0 0.0
        %1627 = vmatprep.subr.mxu0 0.0
        %1628 = vmatpush1.msra.mxu0 0.0
        %1629 = vmatprep.subr.mxu0 0.0
        %1630 = vmatpush1.msra.mxu0 0.0
        %1631 = vmatprep.subr.mxu0 0.0
        %1632 = vmatpush1.msra.mxu0 0.0
        %1633 = vmatprep.subr.mxu0 0.0
        %1634 = vmatpush1.msra.mxu0 0.0
        %1635 = vmatprep.subr.mxu0 0.0
        %1636 = vmatpush1.msra.mxu0 %v1613
        %1637 = vmatprep.subr.mxu0 0.0
        %1638 = vmatpush1.msra.mxu0 %v1612
        %1639 = vmatprep.subr.mxu0 0.0
        %1640 = vmatpush1.msra.mxu0 %v1611
        %1641 = vmatprep.subr.mxu0 0.0
        %1642 = vmatpush1.msra.mxu0 %v1610
        %1643 = vmatprep.subr.mxu0 0.0
        %1644 = vmatpush1.msra.mxu0 %v1609
        %1645 = vmatprep.subr.mxu0 0.0
        %1646 = vmatpush1.msra.mxu0 %v1608
        %1647 = vmatprep.subr.mxu0 0.0
        %1648 = vmatpush1.msra.mxu0 %v1607
        %1649 = vmatprep.subr.mxu0 0.0
        %1650 = vmatpush1.msra.mxu0 %v1606
        %1651 = vmatprep.subr.mxu0 0.0
        %1652 = vmatpush2.msra.mxu0 0.0
        %1653 = vmatprep.subr.mxu0 0.0
        %1654 = vmatpush2.msra.mxu0 0.0
        %1655 = vmatprep.subr.mxu0 0.0
        %1656 = vmatpush2.msra.mxu0 0.0
        %1657 = vmatprep.subr.mxu0 0.0
        %1658 = vmatpush2.msra.mxu0 0.0
        %1659 = vmatprep.subr.mxu0 0.0
        %1660 = vmatpush2.msra.mxu0 0.0
        %1661 = vmatprep.subr.mxu0 0.0
        %1662 = vmatpush2.msra.mxu0 0.0
        %1663 = vmatprep.subr.mxu0 0.0
        %1664 = vmatpush2.msra.mxu0 0.0
        %1665 = vmatprep.subr.mxu0 0.0
        %1666 = vmatpush2.msra.mxu0 0.0
        %1667 = vmatprep.subr.mxu0 0.0
        %1668 = vmatpush2.msra.mxu0 0.0
        %1669 = vmatprep.subr.mxu0 0.0
        %1670 = vmatpush2.msra.mxu0 0.0
        %1671 = vmatprep.subr.mxu0 0.0
        %1672 = vmatpush2.msra.mxu0 0.0
        %1673 = vmatprep.subr.mxu0 0.0
        %1674 = vmatpush2.msra.mxu0 0.0
        %1675 = vmatprep.subr.mxu0 0.0
        %1676 = vmatpush2.msra.mxu0 0.0
        %1677 = vmatprep.subr.mxu0 0.0
        %1678 = vmatpush2.msra.mxu0 0.0
        %1679 = vmatprep.subr.mxu0 0.0
        %1680 = vmatpush2.msra.mxu0 0.0
        %1681 = vmatprep.subr.mxu0 0.0
        %1682 = vmatpush2.msra.mxu0 0.0
        %1683 = vmatprep.mubr.f32.mxu0 0.0
        %1684 = vmatmul.mubr.f32.gmra.mxu0 %v1617
        %v1685 = vpop.f32.mrf.mxu0
        %v1686 = vadd.f32 %v1614, %v1685
        %v1687 = vpop.f32.mrf.mxu0
        %1688 = vdwg.mxu0
        %vm1689 = vcmask 32768
        %1690 = vst.msk [vmem:[%s295] sm:$0x1] %vm1689, %v1686
        %s1691 = sand.u32 %s184, 1
        %s1692 = scalar_lea.sflag [#allocation6], %s1691
        %s1693 = sand.u32 %s184, 1
        %s1694 = scalar_lea.vmem [#allocation7], %s1693
        // Predicated region
        $region53: #{cnn_classifier_forward.1} parent=47 // pred_check
          %p1695 = pneg %p194
        $region54: #{cnn_classifier_forward.1} parent=47 // pred_check_branch
          %1697 = sbr.rel (%p1695) target = $region56
        $region55: #{cnn_classifier_forward.1} parent=47 // pred_region
          %s1699 = ssub.s32 16, 16
          %1700 = vsyncadd %s1692, %s1699
          %s1701 = smul.addr %s24, 16
          %s1702 = scalar_lea.hbm %s7, %s1701
          %s1704 = sshll.u32 %s1694, 4
          %s1705 = int_to_ptr.vmem [resolvable:$true] %s1704
          %1707 = dma.vmem_to_hbm [thread:$0]  %s1705, 16, %s1702, %s1692
        $region56: #{cnn_classifier_forward.1} parent=47 // pred_fallthru
          _
      $region48: #{cnn_classifier_forward.1} parent=5 // pred_fallthru
        _
      %p1708 = scmp.le.s32.totalorder 2, %s19
      // Predicated region
      $region57: #{cnn_classifier_forward.1} parent=5 // pred_check
        %p1709 = pneg %p1708
      $region58: #{cnn_classifier_forward.1} parent=5 // pred_check_branch
        %1711 = sbr.rel (%p1709) target = $region60
      $region59: #{cnn_classifier_forward.1} parent=5 // pred_region
        %s1712 = ssub.s32 %s19, 2
        // Predicated region
        $region61: #{cnn_classifier_forward.1} parent=59 // pred_check
          %p1713 = pneg %p200
        $region62: #{cnn_classifier_forward.1} parent=59 // pred_check_branch
          %1715 = sbr.rel (%p1713) target = $region64
        $region63: #{cnn_classifier_forward.1} parent=59 // pred_region
          %s1716 = sand.u32 %s185, 1
          %s1717 = scalar_lea.sflag [#allocation6], %s1716
          %s1718 = sand.u32 %s185, 1
          %s1719 = scalar_lea.vmem [#allocation7], %s1718
          %1720 = dma.done %s1717, 16
        $region64: #{cnn_classifier_forward.1} parent=59 // pred_fallthru
          _
      $region60: #{cnn_classifier_forward.1} parent=5 // pred_fallthru
        _
    $region6: #{cnn_classifier_forward.1} parent=1 // loop_footer
      %s23 = sadd.s32 1, %s19
    $region7: #{cnn_classifier_forward.1} parent=1 // loop_footer_branch
      %18 = sbr.rel target = $region3
    $region8: #{cnn_classifier_forward.1} parent=1 // loop_exit
      _
    %1721 = vsyncpa [#allocation5], 1
    %s1722 = scalar_lea.sflag [#allocation5], 1
    %1723 = vsyncpa %s1722, 1
    %1724 = vsyncpa [#allocation6], 1
    %s1725 = scalar_lea.sflag [#allocation6], 1
    %1726 = vsyncpa %s1725, 1

</llo_original>
